<compile_context>
chip_gen: v7x
topology: tpu7x:2x2x1
jax: 0.10.0
libtpu: 0.0.40
codegen_flags: <defaults>
</compile_context>

<pallas_src>
import jax
import jax.numpy as jnp
from jax import lax
from jax.experimental import pallas as pl
from jax.experimental.pallas import tpu as pltpu


def clip_finetune_kernel(x_ref, wenc_ref, wcls_ref, b_ref, out_ref, acc_ref):
    k = pl.program_id(1)

    # --- init accumulator on first K step ---
    @pl.when(k == 0)
    def _():
        acc_ref[...] = jnp.zeros_like(acc_ref)

    # --- synthetic encode_image: bf16 inputs, fp32 MXU accumulation ---
    acc_ref[...] += jnp.dot(x_ref[...], wenc_ref[...],
                            preferred_element_type=jnp.float32)

    # --- finalize on last K step: L2-normalize + classifier + bias ---
    @pl.when(k == pl.num_programs(1) - 1)
    def _():
        feats = acc_ref[...]                                   # f32
        sq_norm = jnp.sum(feats * feats, axis=-1, keepdims=True)
        # 1 / max(||v||, eps) == rsqrt(max(||v||^2, eps^2)); rsqrt -> EUP slot.
        feats = feats * lax.rsqrt(jnp.maximum(sq_norm, 1e-24))
        # Classifier on the bf16 MXU path, fp32 accumulation.
        logits = jnp.dot(feats.astype(jnp.bfloat16), wcls_ref[...],
                         preferred_element_type=jnp.float32)
        out_ref[...] = logits + b_ref[...]                     # bias broadcast


def _pad_to(n, m):
    return ((n + m - 1) // m) * m


def _vmem_limit_bytes(tm, tk, Dp, NCp):
    """Size the scoped-VMEM request from the actual double-buffered tiles."""
    x_b = tm * tk * 2 * 2          # bf16, 2 buffers
    wenc_b = tk * Dp * 2 * 2       # bf16, 2 buffers
    wcls_b = Dp * NCp * 2 * 2      # bf16, worst case 2 buffers (fallback path)
    bias_b = NCp * 4 * 2
    out_b = tm * NCp * 4 * 2       # f32, 2 buffers
    acc_b = tm * Dp * 4            # f32 scratch accumulator
    total = x_b + wenc_b + wcls_b + bias_b + out_b + acc_b
    limit = int(total * 1.5) + (8 << 20)          # headroom for compiler scratch
    return max(16 << 20, min(limit, 64 << 20))    # fits v7x's 64 MiB budget


def prepare_clip_finetuner_params(w_enc, w_cls, b_cls):
    """One-time weight prep: pad to lane-friendly shapes and cast to bf16.

    Hoisted out of the per-call wrapper so a real CLIP projection is not
    re-padded / re-cast (an extra full HBM pass) on every forward.
    """
    Din, D = w_enc.shape
    NC = w_cls.shape[1]
    Dinp = _pad_to(Din, 128)
    Dp = _pad_to(D, 128)
    NCp = _pad_to(NC, 128)

    wenc_p = jnp.zeros((Dinp, Dp), jnp.bfloat16).at[:Din, :D].set(
        w_enc.astype(jnp.bfloat16))
    wcls_p = jnp.zeros((Dp, NCp), jnp.bfloat16).at[:D, :NC].set(
        w_cls.astype(jnp.bfloat16))
    b_p = jnp.zeros((1, NCp), jnp.float32).at[0, :NC].set(
        b_cls.astype(jnp.float32))

    return {"wenc": wenc_p, "wcls": wcls_p, "bias": b_p,
            "Din": Din, "D": D, "NC": NC}


def clip_finetuner_forward(x_nchw, params, *, tm_max=512, tk_max=2048):
    """x_nchw: [B,C,H,W] f32; params: output of prepare_clip_finetuner_params."""
    B = x_nchw.shape[0]
    Din, NC = params["Din"], params["NC"]
    wenc_p, wcls_p, b_p = params["wenc"], params["wcls"], params["bias"]
    Dinp, Dp = wenc_p.shape
    NCp = wcls_p.shape[1]

    x_flat = x_nchw.reshape(B, Din)   # row-major flatten (matches torch)

    # --- tile selection ---------------------------------------------------
    # Batch tile: as large as useful (up to tm_max) but never padding a tiny
    # batch up to 128+ rows.
    tm = min(tm_max, _pad_to(max(B, 1), 8))
    tm = max(8, tm - (tm % 8))
    Bp = _pad_to(max(B, 1), tm)
    # K tile: big (amortizes per-step overhead, long efficient w_enc DMAs),
    # multiple of 128 and an exact divisor of the padded Din.
    tk = max(128, min(tk_max, Dinp))
    tk -= tk % 128
    while Dinp % tk:
        tk -= 128

    # --- activations: pad only when actually misaligned --------------------
    # TODO(synk): the bf16 cast itself could be fused into the kernel input via
    #             CompilerParams(allow_input_fusion=...) to avoid one HBM pass.
    if Bp == B and Dinp == Din:
        x_p = x_flat.astype(jnp.bfloat16)
    else:
        x_p = jnp.zeros((Bp, Dinp), jnp.bfloat16).at[:B, :Din].set(
            x_flat.astype(jnp.bfloat16))

    grid = (Bp // tm, Dinp // tk)

    def build(single_buffer_resident):
        resident_kwargs = (
            {"pipeline_mode": pl.Buffered(1)} if single_buffer_resident else {})
        in_specs = [
            pl.BlockSpec((tm, tk), lambda m, k: (m, k)),     # x tile
            pl.BlockSpec((tk, Dp), lambda m, k: (k, 0)),     # w_enc tile
            pl.BlockSpec((Dp, NCp), lambda m, k: (0, 0),     # w_cls (resident)
                         **resident_kwargs),
            pl.BlockSpec((1, NCp), lambda m, k: (0, 0),      # bias   (resident)
                         **resident_kwargs),
        ]
        return pl.pallas_call(
            clip_finetune_kernel,
            out_shape=jax.ShapeDtypeStruct((Bp, NCp), jnp.float32),
            grid_spec=pltpu.PrefetchScalarGridSpec(
                num_scalar_prefetch=0,
                grid=grid,
                in_specs=in_specs,
                out_specs=pl.BlockSpec((tm, NCp), lambda m, k: (m, 0)),
                scratch_shapes=[pltpu.VMEM((tm, Dp), jnp.float32)],  # fp32 acc
            ),
            compiler_params=pltpu.CompilerParams(
                dimension_semantics=("parallel", "arbitrary"),
                vmem_limit_bytes=_vmem_limit_bytes(tm, tk, Dp, NCp),
            ),
        )

    try:
        out_p = build(True)(x_p, wenc_p, wcls_p, b_p)
    except Exception:
        # Fallback if this JAX build rejects pipeline_mode=pl.Buffered(1) on
        # resident operands: identical kernel, default double-buffering.
        out_p = build(False)(x_p, wenc_p, wcls_p, b_p)

    return out_p[:B, :NC]


if __name__ == "__main__":
    key = jax.random.PRNGKey(0)
    k_x, k_enc, k_cls, k_b = jax.random.split(key, 4)

    # Small shapes implied by the forward pass (NCHW image in, logits out).
    B, C, H, W = 2, 4, 16, 16
    D = 32            # model.visual.output_dim
    NC = 8            # num_classes
    Din = C * H * W   # 1024

    x = jax.random.normal(k_x, (B, C, H, W), jnp.float32)

    # Deterministic synthetic parameters (no checkpoint load).
    w_enc = 0.02 * jax.random.normal(k_enc, (Din, D), jnp.float32)   # encode_image stub
    w_cls = 0.02 * jax.random.normal(k_cls, (D, NC), jnp.float32)    # classifier weight
    b_cls = 0.02 * jax.random.normal(k_b, (NC,), jnp.float32)        # classifier bias

    # One-time weight prep (padding + bf16 cast hoisted out of the hot path).
    params = prepare_clip_finetuner_params(w_enc, w_cls, b_cls)

    # Default tiling (single K step at this Din) ...
    out = clip_finetuner_forward(x, params)
    # ... and a small-tk run that exercises the multi-step K accumulator path.
    out_multi_k = clip_finetuner_forward(x, params, tk_max=256)
    jax.block_until_ready((out, out_multi_k))

    # Pure-JAX reference with matching numerics (bf16 streams, f32 accumulation).
    feats_ref = jnp.dot(x.reshape(B, Din).astype(jnp.bfloat16),
                        w_enc.astype(jnp.bfloat16),
                        preferred_element_type=jnp.float32)
    sqn = jnp.sum(feats_ref * feats_ref, axis=-1, keepdims=True)
    feats_ref = feats_ref * lax.rsqrt(jnp.maximum(sqn, 1e-24))
    ref = jnp.dot(feats_ref.astype(jnp.bfloat16), w_cls.astype(jnp.bfloat16),
                  preferred_element_type=jnp.float32) + b_cls

    assert out.shape == (B, NC) and out.dtype == jnp.float32
    assert jnp.allclose(out, ref, atol=2e-3, rtol=2e-2), \
        "mismatch vs reference (default tiling)"
    assert jnp.allclose(out_multi_k, ref, atol=2e-3, rtol=2e-2), \
        "mismatch vs reference (multi-K tiling)"

    print("KERNEL_OK")
</pallas_src>

<mosaic_0001>
module attributes {stable_mosaic.version = 11 : i64} {
  func.func @clip_finetune_kernel(%arg0: i32, %arg1: i32, %arg2: memref<8x1024xbf16, #tpu.memory_space<vmem>>, %arg3: memref<1024x128xbf16, #tpu.memory_space<vmem>>, %arg4: memref<128x128xbf16, #tpu.memory_space<vmem>>, %arg5: memref<1x128xf32, #tpu.memory_space<vmem>>, %arg6: memref<8x128xf32, #tpu.memory_space<vmem>>, %arg7: memref<8x128xf32, #tpu.memory_space<vmem>>) attributes {dimension_semantics = [#tpu.dimension_semantics<parallel>, #tpu.dimension_semantics<arbitrary>], iteration_bounds = array<i64: 1, 1>, scalar_prefetch = 0 : i64, scratch_operands = 1 : i64, tpu.core_type = #tpu.core_type<tc>, window_params = [{transform_indices = @transform_0, window_bounds = array<i64: 8, 1024>}, {transform_indices = @transform_1, window_bounds = array<i64: 1024, 128>}, {pipeline_mode = #tpu.pipeline_mode<synchronous>, transform_indices = @transform_2, window_bounds = array<i64: 128, 128>}, {pipeline_mode = #tpu.pipeline_mode<synchronous>, transform_indices = @transform_3, window_bounds = array<i64: 1, 128>}, {transform_indices = @transform_4, window_bounds = array<i64: 8, 128>}]} {
    %c0_i32 = arith.constant 0 : i32
    %0 = arith.cmpi eq, %arg1, %c0_i32 : i32
    %1 = arith.extui %0 : i1 to i32
    %c0_i32_0 = arith.constant 0 : i32
    %2 = arith.cmpi ne, %1, %c0_i32_0 : i32
    scf.if %2 {
      %cst_10 = arith.constant 0.000000e+00 : f32
      %12 = vector.broadcast %cst_10 : f32 to vector<8x128xf32>
      %c0_11 = arith.constant 0 : index
      %c0_12 = arith.constant 0 : index
      %13 = vector.load %arg7[%c0_11, %c0_12] : memref<8x128xf32, #tpu.memory_space<vmem>>, vector<8x128xf32>
      tpu.vector_store %arg7[%c0_11, %c0_12], %12 {strides = array<i32>} : memref<8x128xf32, #tpu.memory_space<vmem>>, vector<8x128xf32>,
    } else {
    }
    %c0 = arith.constant 0 : index
    %c0_1 = arith.constant 0 : index
    %3 = vector.load %arg7[%c0, %c0_1] : memref<8x128xf32, #tpu.memory_space<vmem>>, vector<8x128xf32>
    %c0_2 = arith.constant 0 : index
    %c0_3 = arith.constant 0 : index
    %4 = vector.load %arg2[%c0_2, %c0_3] : memref<8x1024xbf16, #tpu.memory_space<vmem>>, vector<8x1024xbf16>
    %c0_4 = arith.constant 0 : index
    %c0_5 = arith.constant 0 : index
    %5 = vector.load %arg3[%c0_4, %c0_5] : memref<1024x128xbf16, #tpu.memory_space<vmem>>, vector<1024x128xbf16>
    %cst = arith.constant dense<0.000000e+00> : vector<8x128xf32>
    %6 = tpu.matmul %4, %5, %cst {dimension_numbers = #tpu.dot_dimension_numbers<[1], [0], [0], [1], [0, 0, 1, 1], [], []>} : vector<8x1024xbf16>, vector<1024x128xbf16>, vector<8x128xf32> -> vector<8x128xf32>
    %7 = arith.addf %3, %6 : vector<8x128xf32>
    %c0_6 = arith.constant 0 : index
    %c0_7 = arith.constant 0 : index
    %8 = vector.load %arg7[%c0_6, %c0_7] : memref<8x128xf32, #tpu.memory_space<vmem>>, vector<8x128xf32>
    tpu.vector_store %arg7[%c0_6, %c0_7], %7 {strides = array<i32>} : memref<8x128xf32, #tpu.memory_space<vmem>>, vector<8x128xf32>,
    %c0_i32_8 = arith.constant 0 : i32
    %9 = arith.cmpi eq, %arg1, %c0_i32_8 : i32
    %10 = arith.extui %9 : i1 to i32
    %c0_i32_9 = arith.constant 0 : i32
    %11 = arith.cmpi ne, %10, %c0_i32_9 : i32
    scf.if %11 {
      %c0_10 = arith.constant 0 : index
      %c0_11 = arith.constant 0 : index
      %12 = vector.load %arg7[%c0_10, %c0_11] : memref<8x128xf32, #tpu.memory_space<vmem>>, vector<8x128xf32>
      %13 = arith.mulf %12, %12 : vector<8x128xf32>
      %cst_12 = arith.constant dense<0.000000e+00> : vector<8xf32>
      %14 = vector.multi_reduction <add>, %13, %cst_12 [1] : vector<8x128xf32> to vector<8xf32>
      %15 = vector.shape_cast %14 : vector<8xf32> to vector<8x1xf32>
      %cst_13 = arith.constant 1.000000e-24 : f32
      %16 = vector.broadcast %cst_13 : f32 to vector<8x1xf32>
      %17 = arith.maximumf %15, %16 : vector<8x1xf32>
      %18 = math.rsqrt %17 : vector<8x1xf32>
      %19 = vector.broadcast %18 : vector<8x1xf32> to vector<8x128xf32>
      %20 = arith.mulf %12, %19 : vector<8x128xf32>
      %21 = arith.truncf %20 : vector<8x128xf32> to vector<8x128xbf16>
      %c0_14 = arith.constant 0 : index
      %c0_15 = arith.constant 0 : index
      %22 = vector.load %arg4[%c0_14, %c0_15] : memref<128x128xbf16, #tpu.memory_space<vmem>>, vector<128x128xbf16>
      %cst_16 = arith.constant dense<0.000000e+00> : vector<8x128xf32>
      %23 = tpu.matmul %21, %22, %cst_16 {dimension_numbers = #tpu.dot_dimension_numbers<[1], [0], [0], [1], [0, 0, 1, 1], [], []>} : vector<8x128xbf16>, vector<128x128xbf16>, vector<8x128xf32> -> vector<8x128xf32>
      %c0_17 = arith.constant 0 : index
      %c0_18 = arith.constant 0 : index
      %24 = vector.load %arg5[%c0_17, %c0_18] : memref<1x128xf32, #tpu.memory_space<vmem>>, vector<1x128xf32>
      %25 = vector.broadcast %24 : vector<1x128xf32> to vector<8x128xf32>
      %26 = arith.addf %23, %25 : vector<8x128xf32>
      %c0_19 = arith.constant 0 : index
      %c0_20 = arith.constant 0 : index
      %27 = vector.load %arg6[%c0_19, %c0_20] : memref<8x128xf32, #tpu.memory_space<vmem>>, vector<8x128xf32>
      tpu.vector_store %arg6[%c0_19, %c0_20], %26 {strides = array<i32>} : memref<8x128xf32, #tpu.memory_space<vmem>>, vector<8x128xf32>,
    } else {
    }
    return
  }
  func.func @transform_0(%arg0: i32, %arg1: i32) -> (i32, i32) {
    %c0_i32 = arith.constant 0 : i32
    return %arg0, %arg1 : i32, i32
  }
  func.func @transform_1(%arg0: i32, %arg1: i32) -> (i32, i32) {
    %c0_i32 = arith.constant 0 : i32
    %c0_i32_0 = arith.constant 0 : i32
    return %arg1, %c0_i32 : i32, i32
  }
  func.func @transform_2(%arg0: i32, %arg1: i32) -> (i32, i32) {
    %c0_i32 = arith.constant 0 : i32
    %c0_i32_0 = arith.constant 0 : i32
    %c0_i32_1 = arith.constant 0 : i32
    return %c0_i32, %c0_i32_0 : i32, i32
  }
  func.func @transform_3(%arg0: i32, %arg1: i32) -> (i32, i32) {
    %c0_i32 = arith.constant 0 : i32
    %c0_i32_0 = arith.constant 0 : i32
    %c0_i32_1 = arith.constant 0 : i32
    return %c0_i32, %c0_i32_0 : i32, i32
  }
  func.func @transform_4(%arg0: i32, %arg1: i32) -> (i32, i32) {
    %c0_i32 = arith.constant 0 : i32
    %c0_i32_0 = arith.constant 0 : i32
    return %arg0, %c0_i32 : i32, i32
  }
}

module attributes {stable_mosaic.version = 11 : i64} {
  func.func @clip_finetune_kernel(%arg0: i32, %arg1: i32, %arg2: memref<8x1024xbf16, #tpu.memory_space<vmem>>, %arg3: memref<1024x128xbf16, #tpu.memory_space<vmem>>, %arg4: memref<128x128xbf16, #tpu.memory_space<vmem>>, %arg5: memref<1x128xf32, #tpu.memory_space<vmem>>, %arg6: memref<8x128xf32, #tpu.memory_space<vmem>>, %arg7: memref<8x128xf32, #tpu.memory_space<vmem>>) attributes {dimension_semantics = [#tpu.dimension_semantics<parallel>, #tpu.dimension_semantics<arbitrary>], iteration_bounds = array<i64: 1, 1>, scalar_prefetch = 0 : i64, scratch_operands = 1 : i64, tpu.core_type = #tpu.core_type<tc>, window_params = [{transform_indices = @transform_0, window_bounds = array<i64: 8, 1024>}, {transform_indices = @transform_1, window_bounds = array<i64: 1024, 128>}, {pipeline_mode = #tpu.pipeline_mode<synchronous>, transform_indices = @transform_2, window_bounds = array<i64: 128, 128>}, {pipeline_mode = #tpu.pipeline_mode<synchronous>, transform_indices = @transform_3, window_bounds = array<i64: 1, 128>}, {transform_indices = @transform_4, window_bounds = array<i64: 8, 128>}]} {
    %c0_i32 = arith.constant 0 : i32
    %0 = arith.cmpi eq, %arg1, %c0_i32 : i32
    %1 = arith.extui %0 : i1 to i32
    %c0_i32_0 = arith.constant 0 : i32
    %2 = arith.cmpi ne, %1, %c0_i32_0 : i32
    scf.if %2 {
      %cst_10 = arith.constant 0.000000e+00 : f32
      %12 = vector.broadcast %cst_10 : f32 to vector<8x128xf32>
      %c0_11 = arith.constant 0 : index
      %c0_12 = arith.constant 0 : index
      %13 = vector.load %arg7[%c0_11, %c0_12] : memref<8x128xf32, #tpu.memory_space<vmem>>, vector<8x128xf32>
      tpu.vector_store %arg7[%c0_11, %c0_12], %12 {strides = array<i32>} : memref<8x128xf32, #tpu.memory_space<vmem>>, vector<8x128xf32>,
    } else {
    }
    %c0 = arith.constant 0 : index
    %c0_1 = arith.constant 0 : index
    %3 = vector.load %arg7[%c0, %c0_1] : memref<8x128xf32, #tpu.memory_space<vmem>>, vector<8x128xf32>
    %c0_2 = arith.constant 0 : index
    %c0_3 = arith.constant 0 : index
    %4 = vector.load %arg2[%c0_2, %c0_3] : memref<8x1024xbf16, #tpu.memory_space<vmem>>, vector<8x1024xbf16>
    %c0_4 = arith.constant 0 : index
    %c0_5 = arith.constant 0 : index
    %5 = vector.load %arg3[%c0_4, %c0_5] : memref<1024x128xbf16, #tpu.memory_space<vmem>>, vector<1024x128xbf16>
    %cst = arith.constant dense<0.000000e+00> : vector<8x128xf32>
    %6 = tpu.matmul %4, %5, %cst {dimension_numbers = #tpu.dot_dimension_numbers<[1], [0], [0], [1], [0, 0, 1, 1], [], []>} : vector<8x1024xbf16>, vector<1024x128xbf16>, vector<8x128xf32> -> vector<8x128xf32>
    %7 = arith.addf %3, %6 : vector<8x128xf32>
    %c0_6 = arith.constant 0 : index
    %c0_7 = arith.constant 0 : index
    %8 = vector.load %arg7[%c0_6, %c0_7] : memref<8x128xf32, #tpu.memory_space<vmem>>, vector<8x128xf32>
    tpu.vector_store %arg7[%c0_6, %c0_7], %7 {strides = array<i32>} : memref<8x128xf32, #tpu.memory_space<vmem>>, vector<8x128xf32>,
    %c0_i32_8 = arith.constant 0 : i32
    %9 = arith.cmpi eq, %arg1, %c0_i32_8 : i32
    %10 = arith.extui %9 : i1 to i32
    %c0_i32_9 = arith.constant 0 : i32
    %11 = arith.cmpi ne, %10, %c0_i32_9 : i32
    scf.if %11 {
      %c0_10 = arith.constant 0 : index
      %c0_11 = arith.constant 0 : index
      %12 = vector.load %arg7[%c0_10, %c0_11] : memref<8x128xf32, #tpu.memory_space<vmem>>, vector<8x128xf32>
      %13 = arith.mulf %12, %12 : vector<8x128xf32>
      %cst_12 = arith.constant dense<0.000000e+00> : vector<8xf32>
      %14 = vector.multi_reduction <add>, %13, %cst_12 [1] : vector<8x128xf32> to vector<8xf32>
      %15 = vector.shape_cast %14 : vector<8xf32> to vector<8x1xf32>
      %cst_13 = arith.constant 1.000000e-24 : f32
      %16 = vector.broadcast %cst_13 : f32 to vector<8x1xf32>
      %17 = arith.maximumf %15, %16 : vector<8x1xf32>
      %18 = math.rsqrt %17 : vector<8x1xf32>
      %19 = vector.broadcast %18 : vector<8x1xf32> to vector<8x128xf32>
      %20 = arith.mulf %12, %19 : vector<8x128xf32>
      %21 = arith.truncf %20 : vector<8x128xf32> to vector<8x128xbf16>
      %c0_14 = arith.constant 0 : index
      %c0_15 = arith.constant 0 : index
      %22 = vector.load %arg4[%c0_14, %c0_15] : memref<128x128xbf16, #tpu.memory_space<vmem>>, vector<128x128xbf16>
      %cst_16 = arith.constant dense<0.000000e+00> : vector<8x128xf32>
      %23 = tpu.matmul %21, %22, %cst_16 {dimension_numbers = #tpu.dot_dimension_numbers<[1], [0], [0], [1], [0, 0, 1, 1], [], []>} : vector<8x128xbf16>, vector<128x128xbf16>, vector<8x128xf32> -> vector<8x128xf32>
      %c0_17 = arith.constant 0 : index
      %c0_18 = arith.constant 0 : index
      %24 = vector.load %arg5[%c0_17, %c0_18] : memref<1x128xf32, #tpu.memory_space<vmem>>, vector<1x128xf32>
      %25 = vector.broadcast %24 : vector<1x128xf32> to vector<8x128xf32>
      %26 = arith.addf %23, %25 : vector<8x128xf32>
      %c0_19 = arith.constant 0 : index
      %c0_20 = arith.constant 0 : index
      %27 = vector.load %arg6[%c0_19, %c0_20] : memref<8x128xf32, #tpu.memory_space<vmem>>, vector<8x128xf32>
      tpu.vector_store %arg6[%c0_19, %c0_20], %26 {strides = array<i32>} : memref<8x128xf32, #tpu.memory_space<vmem>>, vector<8x128xf32>,
    } else {
    }
    return
  }
  func.func @transform_0(%arg0: i32, %arg1: i32) -> (i32, i32) {
    %c0_i32 = arith.constant 0 : i32
    return %arg0, %arg1 : i32, i32
  }
  func.func @transform_1(%arg0: i32, %arg1: i32) -> (i32, i32) {
    %c0_i32 = arith.constant 0 : i32
    %c0_i32_0 = arith.constant 0 : i32
    return %arg1, %c0_i32 : i32, i32
  }
  func.func @transform_2(%arg0: i32, %arg1: i32) -> (i32, i32) {
    %c0_i32 = arith.constant 0 : i32
    %c0_i32_0 = arith.constant 0 : i32
    %c0_i32_1 = arith.constant 0 : i32
    return %c0_i32, %c0_i32_0 : i32, i32
  }
  func.func @transform_3(%arg0: i32, %arg1: i32) -> (i32, i32) {
    %c0_i32 = arith.constant 0 : i32
    %c0_i32_0 = arith.constant 0 : i32
    %c0_i32_1 = arith.constant 0 : i32
    return %c0_i32, %c0_i32_0 : i32, i32
  }
  func.func @transform_4(%arg0: i32, %arg1: i32) -> (i32, i32) {
    %c0_i32 = arith.constant 0 : i32
    %c0_i32_0 = arith.constant 0 : i32
    return %arg0, %c0_i32 : i32, i32
  }
}

</mosaic_0001>

<llo_original>
// kernel: tpu_custom_call.1
$region0: #{tpu_custom_call.1}
  #allocation0 [shape = 'u32[]', space=smem, size = 0x4, offset = 0x4, fixed_abs, tag = 'smem constant byte address 0x4 - core index']
  #allocation1 [shape = 'u32[144,128]{1,0:T(1,128)}', space=vmem, size = 0x12000, scoped, tag = 'internal scratch']
  #allocation2 [shape = 'f32[8,128]{1,0:T(8,128)}', space=vmem, size = 0x1000, scoped, tag = 'scratch operand']
  %s0 = inlined_call_operand.hbm [shape: bf16[8,1024], index: 0, kind: input, shape index: {}]
  %s1 = inlined_call_operand.hbm [shape: bf16[1024,128], index: 1, kind: input, shape index: {}]
  %s2 = inlined_call_operand.hbm [shape: bf16[128,128], index: 2, kind: input, shape index: {}]
  %s3 = inlined_call_operand.vmem [shape: f32[1,128], index: 3, kind: input, shape index: {}]
  %s4 = inlined_call_operand.hbm [shape: f32[8,128], index: 4, kind: output, shape index: {}]
  %s5 = sld [smem:[#allocation0]]
  $region46: #{tpu_custom_call.1} parent=0
    _
  %s7 = ssub.s32 1, %s5
  %s8 = scalar_select 0, %s7, %s5
  $region1: #{tpu_custom_call.1} parent=0
    #allocation3 [shape = 'u8[16384]{0}', space=vmem, size = 0x4000, scoped, tag = 'input window, operand 0, single buffered']
    #allocation4 [shape = 's32[1]{0}', space=sflag, size = 0x4, scoped, tag = 'scoped memory for tpu_custom_call.1']
    #allocation5 [shape = 's32[1]{0}', space=sflag, size = 0x4, scoped, tag = 'scoped memory for tpu_custom_call.1']
    #allocation6 [shape = 'u8[262144]{0}', space=vmem, size = 0x40000, scoped, tag = 'input window, operand 1, single buffered']
    #allocation7 [shape = 's32[1]{0}', space=sflag, size = 0x4, scoped, tag = 'scoped memory for tpu_custom_call.1']
    #allocation8 [shape = 'u8[32768]{0}', space=vmem, size = 0x8000, scoped, tag = 'input window, operand 2, single buffered']
    #allocation9 [shape = 'u8[4096]{0}', space=vmem, size = 0x1000, scoped, tag = 'output window, operand 0, single buffered']
    %9 = vsyncpa [#allocation4], 0
    %10 = vsyncpa [#allocation7], 0
    %11 = vsyncpa [#allocation5], 0
    // Predicated region
    $region2: #{tpu_custom_call.1} parent=1 // pred_check
      _
    $region3: #{tpu_custom_call.1} parent=1 // pred_check_branch
      %13 = sbr.rel (0) target = $region5
    $region4: #{tpu_custom_call.1} parent=1 // pred_region
      %s15 = ssub.s32 512, 512
      %16 = vsyncadd [#allocation4], %s15
      %s18 = sshll.u32 [#allocation3], 4
      %s19 = int_to_ptr.vmem [resolvable:$true] %s18
      %21 = dma.hbm_to_vmem [thread:$0]  %s0, 512, %s19, [#allocation4]
    $region5: #{tpu_custom_call.1} parent=1 // pred_fallthru
      _
    // Predicated region
    $region6: #{tpu_custom_call.1} parent=1 // pred_check
      _
    $region7: #{tpu_custom_call.1} parent=1 // pred_check_branch
      %23 = sbr.rel (0) target = $region9
    $region8: #{tpu_custom_call.1} parent=1 // pred_region
      %s25 = ssub.s32 8192, 8192
      %26 = vsyncadd [#allocation7], %s25
      %s27 = sshll.u32 [#allocation6], 4
      %s28 = int_to_ptr.vmem [resolvable:$true] %s27
      %33 = dma.hbm_to_vmem [thread:$0]  %s1, 8192, %s28, [#allocation7], 64, 64, 4
    $region9: #{tpu_custom_call.1} parent=1 // pred_fallthru
      _
    // Predicated region
    $region10: #{tpu_custom_call.1} parent=1 // pred_check
      _
    $region11: #{tpu_custom_call.1} parent=1 // pred_check_branch
      %35 = sbr.rel (0) target = $region13
    $region12: #{tpu_custom_call.1} parent=1 // pred_region
      %s37 = ssub.s32 1024, 1024
      %38 = vsyncadd [#allocation7], %s37
      %s39 = sshll.u32 [#allocation8], 4
      %s40 = int_to_ptr.vmem [resolvable:$true] %s39
      %45 = dma.hbm_to_vmem [thread:$0]  %s2, 1024, %s40, [#allocation7], 64, 64, 4
    $region13: #{tpu_custom_call.1} parent=1 // pred_fallthru
      _
    // Predicated region
    $region14: #{tpu_custom_call.1} parent=1 // pred_check
      _
    $region15: #{tpu_custom_call.1} parent=1 // pred_check_branch
      %47 = sbr.rel (0) target = $region17
    $region16: #{tpu_custom_call.1} parent=1 // pred_region
      _
    $region17: #{tpu_custom_call.1} parent=1 // pred_fallthru
      _
    // Predicated region
    $region18: #{tpu_custom_call.1} parent=1 // pred_check
      _
    $region19: #{tpu_custom_call.1} parent=1 // pred_check_branch
      %49 = sbr.rel (0) target = $region21
    $region20: #{tpu_custom_call.1} parent=1 // pred_region
      %50 = dma.done [#allocation4], 512
    $region21: #{tpu_custom_call.1} parent=1 // pred_fallthru
      _
    // Predicated region
    $region22: #{tpu_custom_call.1} parent=1 // pred_check
      _
    $region23: #{tpu_custom_call.1} parent=1 // pred_check_branch
      %52 = sbr.rel (0) target = $region25
    $region24: #{tpu_custom_call.1} parent=1 // pred_region
      %53 = dma.done [#allocation7], 8192
    $region25: #{tpu_custom_call.1} parent=1 // pred_fallthru
      _
    // Predicated region
    $region26: #{tpu_custom_call.1} parent=1 // pred_check
      _
    $region27: #{tpu_custom_call.1} parent=1 // pred_check_branch
      %55 = sbr.rel (0) target = $region29
    $region28: #{tpu_custom_call.1} parent=1 // pred_region
      %56 = dma.done [#allocation7], 1024
    $region29: #{tpu_custom_call.1} parent=1 // pred_fallthru
      _
    %p58 = scmp.eq.s32.totalorder 0, 0
    // Predicated region
    $region30: #{tpu_custom_call.1} parent=1 // pred_check
      %p59 = pneg %p58
    $region31: #{tpu_custom_call.1} parent=1 // pred_check_branch
      %61 = sbr.rel (%p59) target = $region33
    $region32: #{tpu_custom_call.1} parent=1 // pred_region
      %62 = vst [vmem:[#allocation2] sm:$0xff] 0.0
    $region33: #{tpu_custom_call.1} parent=1 // pred_fallthru
      _
    %v63 = vld [vmem:[#allocation2] sm:$0xff]
    %v64 = vld [vmem:[#allocation3] sm:$0xff]
    %v65 = vld [vmem:[#allocation3 + $0x8] sm:$0xff]
    %v66 = vld [vmem:[#allocation3 + $0x10] sm:$0xff]
    %v67 = vld [vmem:[#allocation3 + $0x18] sm:$0xff]
    %v68 = vld [vmem:[#allocation6] sm:$0xf]
    %v69 = vld [vmem:[#allocation6 + $0x4] sm:$0xf]
    %v70 = vld [vmem:[#allocation6 + $0x8] sm:$0xf]
    %v71 = vld [vmem:[#allocation6 + $0xc] sm:$0xf]
    %v72 = vld [vmem:[#allocation6 + $0x10] sm:$0xf]
    %v73 = vld [vmem:[#allocation6 + $0x14] sm:$0xf]
    %v74 = vld [vmem:[#allocation6 + $0x18] sm:$0xf]
    %v75 = vld [vmem:[#allocation6 + $0x1c] sm:$0xf]
    %v76 = vld [vmem:[#allocation6 + $0x20] sm:$0xf]
    %v77 = vld [vmem:[#allocation6 + $0x24] sm:$0xf]
    %v78 = vld [vmem:[#allocation6 + $0x28] sm:$0xf]
    %v79 = vld [vmem:[#allocation6 + $0x2c] sm:$0xf]
    %v80 = vld [vmem:[#allocation6 + $0x30] sm:$0xf]
    %v81 = vld [vmem:[#allocation6 + $0x34] sm:$0xf]
    %v82 = vld [vmem:[#allocation6 + $0x38] sm:$0xf]
    %v83 = vld [vmem:[#allocation6 + $0x3c] sm:$0xf]
    %v84 = vld [vmem:[#allocation6 + $0x40] sm:$0xf]
    %v85 = vld [vmem:[#allocation6 + $0x44] sm:$0xf]
    %v86 = vld [vmem:[#allocation6 + $0x48] sm:$0xf]
    %v87 = vld [vmem:[#allocation6 + $0x4c] sm:$0xf]
    %v88 = vld [vmem:[#allocation6 + $0x50] sm:$0xf]
    %v89 = vld [vmem:[#allocation6 + $0x54] sm:$0xf]
    %v90 = vld [vmem:[#allocation6 + $0x58] sm:$0xf]
    %v91 = vld [vmem:[#allocation6 + $0x5c] sm:$0xf]
    %v92 = vld [vmem:[#allocation6 + $0x60] sm:$0xf]
    %v93 = vld [vmem:[#allocation6 + $0x64] sm:$0xf]
    %v94 = vld [vmem:[#allocation6 + $0x68] sm:$0xf]
    %v95 = vld [vmem:[#allocation6 + $0x6c] sm:$0xf]
    %v96 = vld [vmem:[#allocation6 + $0x70] sm:$0xf]
    %v97 = vld [vmem:[#allocation6 + $0x74] sm:$0xf]
    %v98 = vld [vmem:[#allocation6 + $0x78] sm:$0xf]
    %v99 = vld [vmem:[#allocation6 + $0x7c] sm:$0xf]
    %v100 = vld [vmem:[#allocation6 + $0x80] sm:$0xf]
    %v101 = vld [vmem:[#allocation6 + $0x84] sm:$0xf]
    %v102 = vld [vmem:[#allocation6 + $0x88] sm:$0xf]
    %v103 = vld [vmem:[#allocation6 + $0x8c] sm:$0xf]
    %v104 = vld [vmem:[#allocation6 + $0x90] sm:$0xf]
    %v105 = vld [vmem:[#allocation6 + $0x94] sm:$0xf]
    %v106 = vld [vmem:[#allocation6 + $0x98] sm:$0xf]
    %v107 = vld [vmem:[#allocation6 + $0x9c] sm:$0xf]
    %v108 = vld [vmem:[#allocation6 + $0xa0] sm:$0xf]
    %v109 = vld [vmem:[#allocation6 + $0xa4] sm:$0xf]
    %v110 = vld [vmem:[#allocation6 + $0xa8] sm:$0xf]
    %v111 = vld [vmem:[#allocation6 + $0xac] sm:$0xf]
    %v112 = vld [vmem:[#allocation6 + $0xb0] sm:$0xf]
    %v113 = vld [vmem:[#allocation6 + $0xb4] sm:$0xf]
    %v114 = vld [vmem:[#allocation6 + $0xb8] sm:$0xf]
    %v115 = vld [vmem:[#allocation6 + $0xbc] sm:$0xf]
    %v116 = vld [vmem:[#allocation6 + $0xc0] sm:$0xf]
    %v117 = vld [vmem:[#allocation6 + $0xc4] sm:$0xf]
    %v118 = vld [vmem:[#allocation6 + $0xc8] sm:$0xf]
    %v119 = vld [vmem:[#allocation6 + $0xcc] sm:$0xf]
    %v120 = vld [vmem:[#allocation6 + $0xd0] sm:$0xf]
    %v121 = vld [vmem:[#allocation6 + $0xd4] sm:$0xf]
    %v122 = vld [vmem:[#allocation6 + $0xd8] sm:$0xf]
    %v123 = vld [vmem:[#allocation6 + $0xdc] sm:$0xf]
    %v124 = vld [vmem:[#allocation6 + $0xe0] sm:$0xf]
    %v125 = vld [vmem:[#allocation6 + $0xe4] sm:$0xf]
    %v126 = vld [vmem:[#allocation6 + $0xe8] sm:$0xf]
    %v127 = vld [vmem:[#allocation6 + $0xec] sm:$0xf]
    %v128 = vld [vmem:[#allocation6 + $0xf0] sm:$0xf]
    %v129 = vld [vmem:[#allocation6 + $0xf4] sm:$0xf]
    %v130 = vld [vmem:[#allocation6 + $0xf8] sm:$0xf]
    %v131 = vld [vmem:[#allocation6 + $0xfc] sm:$0xf]
    %v132 = vld [vmem:[#allocation6 + $0x100] sm:$0xf]
    %v133 = vld [vmem:[#allocation6 + $0x104] sm:$0xf]
    %v134 = vld [vmem:[#allocation6 + $0x108] sm:$0xf]
    %v135 = vld [vmem:[#allocation6 + $0x10c] sm:$0xf]
    %v136 = vld [vmem:[#allocation6 + $0x110] sm:$0xf]
    %v137 = vld [vmem:[#allocation6 + $0x114] sm:$0xf]
    %v138 = vld [vmem:[#allocation6 + $0x118] sm:$0xf]
    %v139 = vld [vmem:[#allocation6 + $0x11c] sm:$0xf]
    %v140 = vld [vmem:[#allocation6 + $0x120] sm:$0xf]
    %v141 = vld [vmem:[#allocation6 + $0x124] sm:$0xf]
    %v142 = vld [vmem:[#allocation6 + $0x128] sm:$0xf]
    %v143 = vld [vmem:[#allocation6 + $0x12c] sm:$0xf]
    %v144 = vld [vmem:[#allocation6 + $0x130] sm:$0xf]
    %v145 = vld [vmem:[#allocation6 + $0x134] sm:$0xf]
    %v146 = vld [vmem:[#allocation6 + $0x138] sm:$0xf]
    %v147 = vld [vmem:[#allocation6 + $0x13c] sm:$0xf]
    %v148 = vld [vmem:[#allocation6 + $0x140] sm:$0xf]
    %v149 = vld [vmem:[#allocation6 + $0x144] sm:$0xf]
    %v150 = vld [vmem:[#allocation6 + $0x148] sm:$0xf]
    %v151 = vld [vmem:[#allocation6 + $0x14c] sm:$0xf]
    %v152 = vld [vmem:[#allocation6 + $0x150] sm:$0xf]
    %v153 = vld [vmem:[#allocation6 + $0x154] sm:$0xf]
    %v154 = vld [vmem:[#allocation6 + $0x158] sm:$0xf]
    %v155 = vld [vmem:[#allocation6 + $0x15c] sm:$0xf]
    %v156 = vld [vmem:[#allocation6 + $0x160] sm:$0xf]
    %v157 = vld [vmem:[#allocation6 + $0x164] sm:$0xf]
    %v158 = vld [vmem:[#allocation6 + $0x168] sm:$0xf]
    %v159 = vld [vmem:[#allocation6 + $0x16c] sm:$0xf]
    %v160 = vld [vmem:[#allocation6 + $0x170] sm:$0xf]
    %v161 = vld [vmem:[#allocation6 + $0x174] sm:$0xf]
    %v162 = vld [vmem:[#allocation6 + $0x178] sm:$0xf]
    %v163 = vld [vmem:[#allocation6 + $0x17c] sm:$0xf]
    %v164 = vld [vmem:[#allocation6 + $0x180] sm:$0xf]
    %v165 = vld [vmem:[#allocation6 + $0x184] sm:$0xf]
    %v166 = vld [vmem:[#allocation6 + $0x188] sm:$0xf]
    %v167 = vld [vmem:[#allocation6 + $0x18c] sm:$0xf]
    %v168 = vld [vmem:[#allocation6 + $0x190] sm:$0xf]
    %v169 = vld [vmem:[#allocation6 + $0x194] sm:$0xf]
    %v170 = vld [vmem:[#allocation6 + $0x198] sm:$0xf]
    %v171 = vld [vmem:[#allocation6 + $0x19c] sm:$0xf]
    %v172 = vld [vmem:[#allocation6 + $0x1a0] sm:$0xf]
    %v173 = vld [vmem:[#allocation6 + $0x1a4] sm:$0xf]
    %v174 = vld [vmem:[#allocation6 + $0x1a8] sm:$0xf]
    %v175 = vld [vmem:[#allocation6 + $0x1ac] sm:$0xf]
    %v176 = vld [vmem:[#allocation6 + $0x1b0] sm:$0xf]
    %v177 = vld [vmem:[#allocation6 + $0x1b4] sm:$0xf]
    %v178 = vld [vmem:[#allocation6 + $0x1b8] sm:$0xf]
    %v179 = vld [vmem:[#allocation6 + $0x1bc] sm:$0xf]
    %v180 = vld [vmem:[#allocation6 + $0x1c0] sm:$0xf]
    %v181 = vld [vmem:[#allocation6 + $0x1c4] sm:$0xf]
    %v182 = vld [vmem:[#allocation6 + $0x1c8] sm:$0xf]
    %v183 = vld [vmem:[#allocation6 + $0x1cc] sm:$0xf]
    %v184 = vld [vmem:[#allocation6 + $0x1d0] sm:$0xf]
    %v185 = vld [vmem:[#allocation6 + $0x1d4] sm:$0xf]
    %v186 = vld [vmem:[#allocation6 + $0x1d8] sm:$0xf]
    %v187 = vld [vmem:[#allocation6 + $0x1dc] sm:$0xf]
    %v188 = vld [vmem:[#allocation6 + $0x1e0] sm:$0xf]
    %v189 = vld [vmem:[#allocation6 + $0x1e4] sm:$0xf]
    %v190 = vld [vmem:[#allocation6 + $0x1e8] sm:$0xf]
    %v191 = vld [vmem:[#allocation6 + $0x1ec] sm:$0xf]
    %v192 = vld [vmem:[#allocation6 + $0x1f0] sm:$0xf]
    %v193 = vld [vmem:[#allocation6 + $0x1f4] sm:$0xf]
    %v194 = vld [vmem:[#allocation6 + $0x1f8] sm:$0xf]
    %v195 = vld [vmem:[#allocation6 + $0x1fc] sm:$0xf]
    %v200 = vunpack.c.l.b16 %v64
    %v201 = vunpack.c.h.b16 %v64
    %v202 = vunpack.c.l.b16 %v65
    %v203 = vunpack.c.h.b16 %v65
    %v204 = vunpack.c.l.b16 %v66
    %v205 = vunpack.c.h.b16 %v66
    %v206 = vunpack.c.l.b16 %v67
    %v207 = vunpack.c.h.b16 %v67
    %v208 = vpack.c.b16 %v200, %v200
    %v209 = vpack.c.b16 %v201, %v201
    %v210 = vpack.c.b16 %v202, %v202
    %v211 = vpack.c.b16 %v203, %v203
    %v212 = vpack.c.b16 %v204, %v204
    %v213 = vpack.c.b16 %v205, %v205
    %v214 = vpack.c.b16 %v206, %v206
    %v215 = vpack.c.b16 %v207, %v207
    %v352 = vunpack.c.l.b16 %v68
    %v353 = vunpack.c.l.b16 %v69
    %v354 = vunpack.c.l.b16 %v70
    %v355 = vunpack.c.l.b16 %v71
    %v356 = vunpack.c.l.b16 %v72
    %v357 = vunpack.c.l.b16 %v73
    %v358 = vunpack.c.l.b16 %v74
    %v359 = vunpack.c.l.b16 %v75
    %v360 = vunpack.c.l.b16 %v76
    %v361 = vunpack.c.l.b16 %v77
    %v362 = vunpack.c.l.b16 %v78
    %v363 = vunpack.c.l.b16 %v79
    %v364 = vunpack.c.l.b16 %v80
    %v365 = vunpack.c.l.b16 %v81
    %v366 = vunpack.c.l.b16 %v82
    %v367 = vunpack.c.l.b16 %v83
    %v368 = vunpack.c.l.b16 %v84
    %v369 = vunpack.c.l.b16 %v85
    %v370 = vunpack.c.l.b16 %v86
    %v371 = vunpack.c.l.b16 %v87
    %v372 = vunpack.c.l.b16 %v88
    %v373 = vunpack.c.l.b16 %v89
    %v374 = vunpack.c.l.b16 %v90
    %v375 = vunpack.c.l.b16 %v91
    %v376 = vunpack.c.l.b16 %v92
    %v377 = vunpack.c.l.b16 %v93
    %v378 = vunpack.c.l.b16 %v94
    %v379 = vunpack.c.l.b16 %v95
    %v380 = vunpack.c.l.b16 %v96
    %v381 = vunpack.c.l.b16 %v97
    %v382 = vunpack.c.l.b16 %v98
    %v383 = vunpack.c.l.b16 %v99
    %v384 = vunpack.c.l.b16 %v100
    %v385 = vunpack.c.l.b16 %v101
    %v386 = vunpack.c.l.b16 %v102
    %v387 = vunpack.c.l.b16 %v103
    %v388 = vunpack.c.l.b16 %v104
    %v389 = vunpack.c.l.b16 %v105
    %v390 = vunpack.c.l.b16 %v106
    %v391 = vunpack.c.l.b16 %v107
    %v392 = vunpack.c.l.b16 %v108
    %v393 = vunpack.c.l.b16 %v109
    %v394 = vunpack.c.l.b16 %v110
    %v395 = vunpack.c.l.b16 %v111
    %v396 = vunpack.c.l.b16 %v112
    %v397 = vunpack.c.l.b16 %v113
    %v398 = vunpack.c.l.b16 %v114
    %v399 = vunpack.c.l.b16 %v115
    %v400 = vunpack.c.l.b16 %v116
    %v401 = vunpack.c.l.b16 %v117
    %v402 = vunpack.c.l.b16 %v118
    %v403 = vunpack.c.l.b16 %v119
    %v404 = vunpack.c.l.b16 %v120
    %v405 = vunpack.c.l.b16 %v121
    %v406 = vunpack.c.l.b16 %v122
    %v407 = vunpack.c.l.b16 %v123
    %v408 = vunpack.c.l.b16 %v124
    %v409 = vunpack.c.l.b16 %v125
    %v410 = vunpack.c.l.b16 %v126
    %v411 = vunpack.c.l.b16 %v127
    %v412 = vunpack.c.l.b16 %v128
    %v413 = vunpack.c.l.b16 %v129
    %v414 = vunpack.c.l.b16 %v130
    %v415 = vunpack.c.l.b16 %v131
    %v416 = vunpack.c.l.b16 %v132
    %v417 = vunpack.c.l.b16 %v133
    %v418 = vunpack.c.l.b16 %v134
    %v419 = vunpack.c.l.b16 %v135
    %v420 = vunpack.c.l.b16 %v136
    %v421 = vunpack.c.l.b16 %v137
    %v422 = vunpack.c.l.b16 %v138
    %v423 = vunpack.c.l.b16 %v139
    %v424 = vunpack.c.l.b16 %v140
    %v425 = vunpack.c.l.b16 %v141
    %v426 = vunpack.c.l.b16 %v142
    %v427 = vunpack.c.l.b16 %v143
    %v428 = vunpack.c.l.b16 %v144
    %v429 = vunpack.c.l.b16 %v145
    %v430 = vunpack.c.l.b16 %v146
    %v431 = vunpack.c.l.b16 %v147
    %v432 = vunpack.c.l.b16 %v148
    %v433 = vunpack.c.l.b16 %v149
    %v434 = vunpack.c.l.b16 %v150
    %v435 = vunpack.c.l.b16 %v151
    %v436 = vunpack.c.l.b16 %v152
    %v437 = vunpack.c.l.b16 %v153
    %v438 = vunpack.c.l.b16 %v154
    %v439 = vunpack.c.l.b16 %v155
    %v440 = vunpack.c.l.b16 %v156
    %v441 = vunpack.c.l.b16 %v157
    %v442 = vunpack.c.l.b16 %v158
    %v443 = vunpack.c.l.b16 %v159
    %v444 = vunpack.c.l.b16 %v160
    %v445 = vunpack.c.l.b16 %v161
    %v446 = vunpack.c.l.b16 %v162
    %v447 = vunpack.c.l.b16 %v163
    %v448 = vunpack.c.l.b16 %v164
    %v449 = vunpack.c.l.b16 %v165
    %v450 = vunpack.c.l.b16 %v166
    %v451 = vunpack.c.l.b16 %v167
    %v452 = vunpack.c.l.b16 %v168
    %v453 = vunpack.c.l.b16 %v169
    %v454 = vunpack.c.l.b16 %v170
    %v455 = vunpack.c.l.b16 %v171
    %v456 = vunpack.c.l.b16 %v172
    %v457 = vunpack.c.l.b16 %v173
    %v458 = vunpack.c.l.b16 %v174
    %v459 = vunpack.c.l.b16 %v175
    %v460 = vunpack.c.l.b16 %v176
    %v461 = vunpack.c.l.b16 %v177
    %v462 = vunpack.c.l.b16 %v178
    %v463 = vunpack.c.l.b16 %v179
    %v464 = vunpack.c.l.b16 %v180
    %v465 = vunpack.c.l.b16 %v181
    %v466 = vunpack.c.l.b16 %v182
    %v467 = vunpack.c.l.b16 %v183
    %v468 = vunpack.c.l.b16 %v184
    %v469 = vunpack.c.l.b16 %v185
    %v470 = vunpack.c.l.b16 %v186
    %v471 = vunpack.c.l.b16 %v187
    %v472 = vunpack.c.l.b16 %v188
    %v473 = vunpack.c.l.b16 %v189
    %v474 = vunpack.c.l.b16 %v190
    %v475 = vunpack.c.l.b16 %v191
    %v476 = vunpack.c.l.b16 %v192
    %v477 = vunpack.c.l.b16 %v193
    %v478 = vunpack.c.l.b16 %v194
    %v479 = vunpack.c.l.b16 %v195
    %v480 = vpack.c.b16 %v353, %v352
    %v481 = vpack.c.b16 %v355, %v354
    %v482 = vpack.c.b16 %v357, %v356
    %v483 = vpack.c.b16 %v359, %v358
    %v484 = vpack.c.b16 %v361, %v360
    %v485 = vpack.c.b16 %v363, %v362
    %v486 = vpack.c.b16 %v365, %v364
    %v487 = vpack.c.b16 %v367, %v366
    %v488 = vpack.c.b16 %v369, %v368
    %v489 = vpack.c.b16 %v371, %v370
    %v490 = vpack.c.b16 %v373, %v372
    %v491 = vpack.c.b16 %v375, %v374
    %v492 = vpack.c.b16 %v377, %v376
    %v493 = vpack.c.b16 %v379, %v378
    %v494 = vpack.c.b16 %v381, %v380
    %v495 = vpack.c.b16 %v383, %v382
    %v496 = vpack.c.b16 %v385, %v384
    %v497 = vpack.c.b16 %v387, %v386
    %v498 = vpack.c.b16 %v389, %v388
    %v499 = vpack.c.b16 %v391, %v390
    %v500 = vpack.c.b16 %v393, %v392
    %v501 = vpack.c.b16 %v395, %v394
    %v502 = vpack.c.b16 %v397, %v396
    %v503 = vpack.c.b16 %v399, %v398
    %v504 = vpack.c.b16 %v401, %v400
    %v505 = vpack.c.b16 %v403, %v402
    %v506 = vpack.c.b16 %v405, %v404
    %v507 = vpack.c.b16 %v407, %v406
    %v508 = vpack.c.b16 %v409, %v408
    %v509 = vpack.c.b16 %v411, %v410
    %v510 = vpack.c.b16 %v413, %v412
    %v511 = vpack.c.b16 %v415, %v414
    %v512 = vpack.c.b16 %v417, %v416
    %v513 = vpack.c.b16 %v419, %v418
    %v514 = vpack.c.b16 %v421, %v420
    %v515 = vpack.c.b16 %v423, %v422
    %v516 = vpack.c.b16 %v425, %v424
    %v517 = vpack.c.b16 %v427, %v426
    %v518 = vpack.c.b16 %v429, %v428
    %v519 = vpack.c.b16 %v431, %v430
    %v520 = vpack.c.b16 %v433, %v432
    %v521 = vpack.c.b16 %v435, %v434
    %v522 = vpack.c.b16 %v437, %v436
    %v523 = vpack.c.b16 %v439, %v438
    %v524 = vpack.c.b16 %v441, %v440
    %v525 = vpack.c.b16 %v443, %v442
    %v526 = vpack.c.b16 %v445, %v444
    %v527 = vpack.c.b16 %v447, %v446
    %v528 = vpack.c.b16 %v449, %v448
    %v529 = vpack.c.b16 %v451, %v450
    %v530 = vpack.c.b16 %v453, %v452
    %v531 = vpack.c.b16 %v455, %v454
    %v532 = vpack.c.b16 %v457, %v456
    %v533 = vpack.c.b16 %v459, %v458
    %v534 = vpack.c.b16 %v461, %v460
    %v535 = vpack.c.b16 %v463, %v462
    %v536 = vpack.c.b16 %v465, %v464
    %v537 = vpack.c.b16 %v467, %v466
    %v538 = vpack.c.b16 %v469, %v468
    %v539 = vpack.c.b16 %v471, %v470
    %v540 = vpack.c.b16 %v473, %v472
    %v541 = vpack.c.b16 %v475, %v474
    %v542 = vpack.c.b16 %v477, %v476
    %v543 = vpack.c.b16 %v479, %v478
    %608 = vmatprep.subr.bf16.mxu0 0
    %609 = vmatpush1.bf16.msra.mxu0 %v480
    %610 = vmatprep.subr.bf16.mxu0 0
    %611 = vmatpush1.bf16.msra.mxu0 %v481
    %612 = vmatprep.subr.bf16.mxu0 0
    %613 = vmatpush1.bf16.msra.mxu0 %v482
    %614 = vmatprep.subr.bf16.mxu0 0
    %615 = vmatpush1.bf16.msra.mxu0 %v483
    %616 = vmatprep.subr.bf16.mxu0 0
    %617 = vmatpush1.bf16.msra.mxu0 %v484
    %618 = vmatprep.subr.bf16.mxu0 0
    %619 = vmatpush1.bf16.msra.mxu0 %v485
    %620 = vmatprep.subr.bf16.mxu0 0
    %621 = vmatpush1.bf16.msra.mxu0 %v486
    %622 = vmatprep.subr.bf16.mxu0 0
    %623 = vmatpush1.bf16.msra.mxu0 %v487
    %624 = vmatprep.subr.bf16.mxu0 0
    %625 = vmatpush1.bf16.msra.mxu0 %v488
    %626 = vmatprep.subr.bf16.mxu0 0
    %627 = vmatpush1.bf16.msra.mxu0 %v489
    %628 = vmatprep.subr.bf16.mxu0 0
    %629 = vmatpush1.bf16.msra.mxu0 %v490
    %630 = vmatprep.subr.bf16.mxu0 0
    %631 = vmatpush1.bf16.msra.mxu0 %v491
    %632 = vmatprep.subr.bf16.mxu0 0
    %633 = vmatpush1.bf16.msra.mxu0 %v492
    %634 = vmatprep.subr.bf16.mxu0 0
    %635 = vmatpush1.bf16.msra.mxu0 %v493
    %636 = vmatprep.subr.bf16.mxu0 0
    %637 = vmatpush1.bf16.msra.mxu0 %v494
    %638 = vmatprep.subr.bf16.mxu0 0
    %639 = vmatpush1.bf16.msra.mxu0 %v495
    %640 = vmatprep.mubr.bf16.mxu0 %v209
    %641 = vmatmul.mubr.bf16.gmra.mrb[0].mxu0 %v208
    %v642 = vpop.f32.mrb[0].mxu0
    %v643 = vadd.f32 0.0, %v642
    %v644 = vpop.f32.mrb[0].mxu0
    %v645 = vpop.f32.mrb[0].mxu0
    %v646 = vpop.f32.mrb[0].mxu0
    %647 = vdwg.mxu0
    %648 = vmatprep.subr.bf16.mxu0 0
    %649 = vmatpush1.bf16.msra.mxu0 %v496
    %650 = vmatprep.subr.bf16.mxu0 0
    %651 = vmatpush1.bf16.msra.mxu0 %v497
    %652 = vmatprep.subr.bf16.mxu0 0
    %653 = vmatpush1.bf16.msra.mxu0 %v498
    %654 = vmatprep.subr.bf16.mxu0 0
    %655 = vmatpush1.bf16.msra.mxu0 %v499
    %656 = vmatprep.subr.bf16.mxu0 0
    %657 = vmatpush1.bf16.msra.mxu0 %v500
    %658 = vmatprep.subr.bf16.mxu0 0
    %659 = vmatpush1.bf16.msra.mxu0 %v501
    %660 = vmatprep.subr.bf16.mxu0 0
    %661 = vmatpush1.bf16.msra.mxu0 %v502
    %662 = vmatprep.subr.bf16.mxu0 0
    %663 = vmatpush1.bf16.msra.mxu0 %v503
    %664 = vmatprep.subr.bf16.mxu0 0
    %665 = vmatpush1.bf16.msra.mxu0 %v504
    %666 = vmatprep.subr.bf16.mxu0 0
    %667 = vmatpush1.bf16.msra.mxu0 %v505
    %668 = vmatprep.subr.bf16.mxu0 0
    %669 = vmatpush1.bf16.msra.mxu0 %v506
    %670 = vmatprep.subr.bf16.mxu0 0
    %671 = vmatpush1.bf16.msra.mxu0 %v507
    %672 = vmatprep.subr.bf16.mxu0 0
    %673 = vmatpush1.bf16.msra.mxu0 %v508
    %674 = vmatprep.subr.bf16.mxu0 0
    %675 = vmatpush1.bf16.msra.mxu0 %v509
    %676 = vmatprep.subr.bf16.mxu0 0
    %677 = vmatpush1.bf16.msra.mxu0 %v510
    %678 = vmatprep.subr.bf16.mxu0 0
    %679 = vmatpush1.bf16.msra.mxu0 %v511
    %680 = vmatprep.mubr.bf16.mxu0 %v211
    %681 = vmatmul.mubr.bf16.gmra.mrb[0].mxu0 %v210
    %v682 = vpop.f32.mrb[0].mxu0
    %v683 = vadd.f32 %v643, %v682
    %v684 = vpop.f32.mrb[0].mxu0
    %v685 = vpop.f32.mrb[0].mxu0
    %v686 = vpop.f32.mrb[0].mxu0
    %687 = vdwg.mxu0
    %688 = vmatprep.subr.bf16.mxu0 0
    %689 = vmatpush1.bf16.msra.mxu0 %v512
    %690 = vmatprep.subr.bf16.mxu0 0
    %691 = vmatpush1.bf16.msra.mxu0 %v513
    %692 = vmatprep.subr.bf16.mxu0 0
    %693 = vmatpush1.bf16.msra.mxu0 %v514
    %694 = vmatprep.subr.bf16.mxu0 0
    %695 = vmatpush1.bf16.msra.mxu0 %v515
    %696 = vmatprep.subr.bf16.mxu0 0
    %697 = vmatpush1.bf16.msra.mxu0 %v516
    %698 = vmatprep.subr.bf16.mxu0 0
    %699 = vmatpush1.bf16.msra.mxu0 %v517
    %700 = vmatprep.subr.bf16.mxu0 0
    %701 = vmatpush1.bf16.msra.mxu0 %v518
    %702 = vmatprep.subr.bf16.mxu0 0
    %703 = vmatpush1.bf16.msra.mxu0 %v519
    %704 = vmatprep.subr.bf16.mxu0 0
    %705 = vmatpush1.bf16.msra.mxu0 %v520
    %706 = vmatprep.subr.bf16.mxu0 0
    %707 = vmatpush1.bf16.msra.mxu0 %v521
    %708 = vmatprep.subr.bf16.mxu0 0
    %709 = vmatpush1.bf16.msra.mxu0 %v522
    %710 = vmatprep.subr.bf16.mxu0 0
    %711 = vmatpush1.bf16.msra.mxu0 %v523
    %712 = vmatprep.subr.bf16.mxu0 0
    %713 = vmatpush1.bf16.msra.mxu0 %v524
    %714 = vmatprep.subr.bf16.mxu0 0
    %715 = vmatpush1.bf16.msra.mxu0 %v525
    %716 = vmatprep.subr.bf16.mxu0 0
    %717 = vmatpush1.bf16.msra.mxu0 %v526
    %718 = vmatprep.subr.bf16.mxu0 0
    %719 = vmatpush1.bf16.msra.mxu0 %v527
    %720 = vmatprep.mubr.bf16.mxu0 %v213
    %721 = vmatmul.mubr.bf16.gmra.mrb[0].mxu0 %v212
    %v722 = vpop.f32.mrb[0].mxu0
    %v723 = vadd.f32 %v683, %v722
    %v724 = vpop.f32.mrb[0].mxu0
    %v725 = vpop.f32.mrb[0].mxu0
    %v726 = vpop.f32.mrb[0].mxu0
    %727 = vdwg.mxu0
    %728 = vmatprep.subr.bf16.mxu0 0
    %729 = vmatpush1.bf16.msra.mxu0 %v528
    %730 = vmatprep.subr.bf16.mxu0 0
    %731 = vmatpush1.bf16.msra.mxu0 %v529
    %732 = vmatprep.subr.bf16.mxu0 0
    %733 = vmatpush1.bf16.msra.mxu0 %v530
    %734 = vmatprep.subr.bf16.mxu0 0
    %735 = vmatpush1.bf16.msra.mxu0 %v531
    %736 = vmatprep.subr.bf16.mxu0 0
    %737 = vmatpush1.bf16.msra.mxu0 %v532
    %738 = vmatprep.subr.bf16.mxu0 0
    %739 = vmatpush1.bf16.msra.mxu0 %v533
    %740 = vmatprep.subr.bf16.mxu0 0
    %741 = vmatpush1.bf16.msra.mxu0 %v534
    %742 = vmatprep.subr.bf16.mxu0 0
    %743 = vmatpush1.bf16.msra.mxu0 %v535
    %744 = vmatprep.subr.bf16.mxu0 0
    %745 = vmatpush1.bf16.msra.mxu0 %v536
    %746 = vmatprep.subr.bf16.mxu0 0
    %747 = vmatpush1.bf16.msra.mxu0 %v537
    %748 = vmatprep.subr.bf16.mxu0 0
    %749 = vmatpush1.bf16.msra.mxu0 %v538
    %750 = vmatprep.subr.bf16.mxu0 0
    %751 = vmatpush1.bf16.msra.mxu0 %v539
    %752 = vmatprep.subr.bf16.mxu0 0
    %753 = vmatpush1.bf16.msra.mxu0 %v540
    %754 = vmatprep.subr.bf16.mxu0 0
    %755 = vmatpush1.bf16.msra.mxu0 %v541
    %756 = vmatprep.subr.bf16.mxu0 0
    %757 = vmatpush1.bf16.msra.mxu0 %v542
    %758 = vmatprep.subr.bf16.mxu0 0
    %759 = vmatpush1.bf16.msra.mxu0 %v543
    %760 = vmatprep.mubr.bf16.mxu0 %v215
    %761 = vmatmul.mubr.bf16.gmra.mrb[0].mxu0 %v214
    %v762 = vpop.f32.mrb[0].mxu0
    %v763 = vadd.f32 %v723, %v762
    %v764 = vpop.f32.mrb[0].mxu0
    %v765 = vpop.f32.mrb[0].mxu0
    %v766 = vpop.f32.mrb[0].mxu0
    %767 = vdwg.mxu0
    %v768 = vadd.f32 %v63, %v763
    %769 = vst [vmem:[#allocation2] sm:$0xff] %v768
    // Predicated region
    $region34: #{tpu_custom_call.1} parent=1 // pred_check
      %p770 = pneg %p58
    $region35: #{tpu_custom_call.1} parent=1 // pred_check_branch
      %772 = sbr.rel (%p770) target = $region37
    $region36: #{tpu_custom_call.1} parent=1 // pred_region
      %v773 = vld [vmem:[#allocation2] sm:$0xff]
      %v774 = vmul.f32 %v773, %v773
      %775 = vadd.xlane.f32.xlu0 %v774
      %v776 = vpop.xlane.xlu0 %775
      %v777 = vmax.f32 %v776, 1e-24
      %v778 = vrsqrt.pop %v777
      %v779 = vmul.f32 %v773, %v778
      %v780 = vpack.c.bf16 %v779, %v779
      %v781 = vld [vmem:[#allocation8] sm:$0xf]
      %v782 = vld [vmem:[#allocation8 + $0x4] sm:$0xf]
      %v783 = vld [vmem:[#allocation8 + $0x8] sm:$0xf]
      %v784 = vld [vmem:[#allocation8 + $0xc] sm:$0xf]
      %v785 = vld [vmem:[#allocation8 + $0x10] sm:$0xf]
      %v786 = vld [vmem:[#allocation8 + $0x14] sm:$0xf]
      %v787 = vld [vmem:[#allocation8 + $0x18] sm:$0xf]
      %v788 = vld [vmem:[#allocation8 + $0x1c] sm:$0xf]
      %v789 = vld [vmem:[#allocation8 + $0x20] sm:$0xf]
      %v790 = vld [vmem:[#allocation8 + $0x24] sm:$0xf]
      %v791 = vld [vmem:[#allocation8 + $0x28] sm:$0xf]
      %v792 = vld [vmem:[#allocation8 + $0x2c] sm:$0xf]
      %v793 = vld [vmem:[#allocation8 + $0x30] sm:$0xf]
      %v794 = vld [vmem:[#allocation8 + $0x34] sm:$0xf]
      %v795 = vld [vmem:[#allocation8 + $0x38] sm:$0xf]
      %v796 = vld [vmem:[#allocation8 + $0x3c] sm:$0xf]
      %v797 = vld [vmem:[%s3] sm:$0x1]
      %v799 = vlaneseq
      %v800 = vshrl.u32 %v799, 7
      %v801 = vsub.s32 0, %v800
      %v802 = vrot.slane %v797, %v801
      %v820 = vunpack.c.l.b16 %v781
      %v821 = vunpack.c.l.b16 %v782
      %v822 = vunpack.c.l.b16 %v783
      %v823 = vunpack.c.l.b16 %v784
      %v824 = vunpack.c.l.b16 %v785
      %v825 = vunpack.c.l.b16 %v786
      %v826 = vunpack.c.l.b16 %v787
      %v827 = vunpack.c.l.b16 %v788
      %v828 = vunpack.c.l.b16 %v789
      %v829 = vunpack.c.l.b16 %v790
      %v830 = vunpack.c.l.b16 %v791
      %v831 = vunpack.c.l.b16 %v792
      %v832 = vunpack.c.l.b16 %v793
      %v833 = vunpack.c.l.b16 %v794
      %v834 = vunpack.c.l.b16 %v795
      %v835 = vunpack.c.l.b16 %v796
      %v836 = vpack.c.b16 %v821, %v820
      %v837 = vpack.c.b16 %v823, %v822
      %v838 = vpack.c.b16 %v825, %v824
      %v839 = vpack.c.b16 %v827, %v826
      %v840 = vpack.c.b16 %v829, %v828
      %v841 = vpack.c.b16 %v831, %v830
      %v842 = vpack.c.b16 %v833, %v832
      %v843 = vpack.c.b16 %v835, %v834
      %852 = vmatprep.subr.bf16.mxu0 0
      %853 = vmatpush1.bf16.msra.mxu0 %v836
      %854 = vmatprep.subr.bf16.mxu0 0
      %855 = vmatpush1.bf16.msra.mxu0 %v837
      %856 = vmatprep.subr.bf16.mxu0 0
      %857 = vmatpush1.bf16.msra.mxu0 %v838
      %858 = vmatprep.subr.bf16.mxu0 0
      %859 = vmatpush1.bf16.msra.mxu0 %v839
      %860 = vmatprep.subr.bf16.mxu0 0
      %861 = vmatpush1.bf16.msra.mxu0 %v840
      %862 = vmatprep.subr.bf16.mxu0 0
      %863 = vmatpush1.bf16.msra.mxu0 %v841
      %864 = vmatprep.subr.bf16.mxu0 0
      %865 = vmatpush1.bf16.msra.mxu0 %v842
      %866 = vmatprep.subr.bf16.mxu0 0
      %867 = vmatpush1.bf16.msra.mxu0 %v843
      %868 = vmatprep.subr.bf16.mxu0 0
      %869 = vmatpush1.bf16.msra.mxu0 0
      %870 = vmatprep.subr.bf16.mxu0 0
      %871 = vmatpush1.bf16.msra.mxu0 0
      %872 = vmatprep.subr.bf16.mxu0 0
      %873 = vmatpush1.bf16.msra.mxu0 0
      %874 = vmatprep.subr.bf16.mxu0 0
      %875 = vmatpush1.bf16.msra.mxu0 0
      %876 = vmatprep.subr.bf16.mxu0 0
      %877 = vmatpush1.bf16.msra.mxu0 0
      %878 = vmatprep.subr.bf16.mxu0 0
      %879 = vmatpush1.bf16.msra.mxu0 0
      %880 = vmatprep.subr.bf16.mxu0 0
      %881 = vmatpush1.bf16.msra.mxu0 0
      %882 = vmatprep.subr.bf16.mxu0 0
      %883 = vmatpush1.bf16.msra.mxu0 0
      %884 = vmatprep.mubr.bf16.mxu0 0
      %885 = vmatmul.mubr.bf16.gmra.mrb[0].mxu0 %v780
      %v886 = vpop.f32.mrb[0].mxu0
      %v887 = vadd.f32 %v802, %v886
      %v888 = vpop.f32.mrb[0].mxu0
      %v889 = vpop.f32.mrb[0].mxu0
      %v890 = vpop.f32.mrb[0].mxu0
      %891 = vdwg.mxu0
      %892 = vst [vmem:[#allocation9] sm:$0xff] %v887
    $region37: #{tpu_custom_call.1} parent=1 // pred_fallthru
      _
    // Predicated region
    $region38: #{tpu_custom_call.1} parent=1 // pred_check
      _
    $region39: #{tpu_custom_call.1} parent=1 // pred_check_branch
      %894 = sbr.rel (0) target = $region41
    $region40: #{tpu_custom_call.1} parent=1 // pred_region
      %s896 = ssub.s32 128, 128
      %897 = vsyncadd [#allocation5], %s896
      %s899 = sshll.u32 [#allocation9], 4
      %s900 = int_to_ptr.vmem [resolvable:$true] %s899
      %902 = dma.vmem_to_hbm [thread:$0]  %s900, 128, %s4, [#allocation5]
    $region41: #{tpu_custom_call.1} parent=1 // pred_fallthru
      _
    // Predicated region
    $region42: #{tpu_custom_call.1} parent=1 // pred_check
      _
    $region43: #{tpu_custom_call.1} parent=1 // pred_check_branch
      %904 = sbr.rel (0) target = $region45
    $region44: #{tpu_custom_call.1} parent=1 // pred_region
      %905 = dma.done [#allocation5], 128
    $region45: #{tpu_custom_call.1} parent=1 // pred_fallthru
      _
    %906 = vsyncpa [#allocation4], 1
    %907 = vsyncpa [#allocation7], 1
    %908 = vsyncpa [#allocation5], 1

// kernel: tpu_custom_call.1
$region0: #{tpu_custom_call.1}
  #allocation0 [shape = 'u32[]', space=smem, size = 0x4, offset = 0x4, fixed_abs, tag = 'smem constant byte address 0x4 - core index']
  #allocation1 [shape = 'u32[144,128]{1,0:T(1,128)}', space=vmem, size = 0x12000, scoped, tag = 'internal scratch']
  #allocation2 [shape = 'f32[8,128]{1,0:T(8,128)}', space=vmem, size = 0x1000, scoped, tag = 'scratch operand']
  %s0 = inlined_call_operand.hbm [shape: bf16[8,1024], index: 0, kind: input, shape index: {}]
  %s1 = inlined_call_operand.hbm [shape: bf16[1024,128], index: 1, kind: input, shape index: {}]
  %s2 = inlined_call_operand.hbm [shape: bf16[128,128], index: 2, kind: input, shape index: {}]
  %s3 = inlined_call_operand.vmem [shape: f32[1,128], index: 3, kind: input, shape index: {}]
  %s4 = inlined_call_operand.hbm [shape: f32[8,128], index: 4, kind: output, shape index: {}]
  %s5 = sld [smem:[#allocation0]]
  $region46: #{tpu_custom_call.1} parent=0
    _
  %s7 = ssub.s32 1, %s5
  %s8 = scalar_select 0, %s7, %s5
  $region1: #{tpu_custom_call.1} parent=0
    #allocation3 [shape = 'u8[16384]{0}', space=vmem, size = 0x4000, scoped, tag = 'input window, operand 0, single buffered']
    #allocation4 [shape = 's32[1]{0}', space=sflag, size = 0x4, scoped, tag = 'scoped memory for tpu_custom_call.1']
    #allocation5 [shape = 's32[1]{0}', space=sflag, size = 0x4, scoped, tag = 'scoped memory for tpu_custom_call.1']
    #allocation6 [shape = 'u8[262144]{0}', space=vmem, size = 0x40000, scoped, tag = 'input window, operand 1, single buffered']
    #allocation7 [shape = 's32[1]{0}', space=sflag, size = 0x4, scoped, tag = 'scoped memory for tpu_custom_call.1']
    #allocation8 [shape = 'u8[32768]{0}', space=vmem, size = 0x8000, scoped, tag = 'input window, operand 2, single buffered']
    #allocation9 [shape = 'u8[4096]{0}', space=vmem, size = 0x1000, scoped, tag = 'output window, operand 0, single buffered']
    %9 = vsyncpa [#allocation4], 0
    %10 = vsyncpa [#allocation7], 0
    %11 = vsyncpa [#allocation5], 0
    // Predicated region
    $region2: #{tpu_custom_call.1} parent=1 // pred_check
      _
    $region3: #{tpu_custom_call.1} parent=1 // pred_check_branch
      %13 = sbr.rel (0) target = $region5
    $region4: #{tpu_custom_call.1} parent=1 // pred_region
      %s15 = ssub.s32 512, 512
      %16 = vsyncadd [#allocation4], %s15
      %s18 = sshll.u32 [#allocation3], 4
      %s19 = int_to_ptr.vmem [resolvable:$true] %s18
      %21 = dma.hbm_to_vmem [thread:$0]  %s0, 512, %s19, [#allocation4]
    $region5: #{tpu_custom_call.1} parent=1 // pred_fallthru
      _
    // Predicated region
    $region6: #{tpu_custom_call.1} parent=1 // pred_check
      _
    $region7: #{tpu_custom_call.1} parent=1 // pred_check_branch
      %23 = sbr.rel (0) target = $region9
    $region8: #{tpu_custom_call.1} parent=1 // pred_region
      %s25 = ssub.s32 8192, 8192
      %26 = vsyncadd [#allocation7], %s25
      %s27 = sshll.u32 [#allocation6], 4
      %s28 = int_to_ptr.vmem [resolvable:$true] %s27
      %33 = dma.hbm_to_vmem [thread:$0]  %s1, 8192, %s28, [#allocation7], 64, 64, 4
    $region9: #{tpu_custom_call.1} parent=1 // pred_fallthru
      _
    // Predicated region
    $region10: #{tpu_custom_call.1} parent=1 // pred_check
      _
    $region11: #{tpu_custom_call.1} parent=1 // pred_check_branch
      %35 = sbr.rel (0) target = $region13
    $region12: #{tpu_custom_call.1} parent=1 // pred_region
      %s37 = ssub.s32 1024, 1024
      %38 = vsyncadd [#allocation7], %s37
      %s39 = sshll.u32 [#allocation8], 4
      %s40 = int_to_ptr.vmem [resolvable:$true] %s39
      %45 = dma.hbm_to_vmem [thread:$0]  %s2, 1024, %s40, [#allocation7], 64, 64, 4
    $region13: #{tpu_custom_call.1} parent=1 // pred_fallthru
      _
    // Predicated region
    $region14: #{tpu_custom_call.1} parent=1 // pred_check
      _
    $region15: #{tpu_custom_call.1} parent=1 // pred_check_branch
      %47 = sbr.rel (0) target = $region17
    $region16: #{tpu_custom_call.1} parent=1 // pred_region
      _
    $region17: #{tpu_custom_call.1} parent=1 // pred_fallthru
      _
    // Predicated region
    $region18: #{tpu_custom_call.1} parent=1 // pred_check
      _
    $region19: #{tpu_custom_call.1} parent=1 // pred_check_branch
      %49 = sbr.rel (0) target = $region21
    $region20: #{tpu_custom_call.1} parent=1 // pred_region
      %50 = dma.done [#allocation4], 512
    $region21: #{tpu_custom_call.1} parent=1 // pred_fallthru
      _
    // Predicated region
    $region22: #{tpu_custom_call.1} parent=1 // pred_check
      _
    $region23: #{tpu_custom_call.1} parent=1 // pred_check_branch
      %52 = sbr.rel (0) target = $region25
    $region24: #{tpu_custom_call.1} parent=1 // pred_region
      %53 = dma.done [#allocation7], 8192
    $region25: #{tpu_custom_call.1} parent=1 // pred_fallthru
      _
    // Predicated region
    $region26: #{tpu_custom_call.1} parent=1 // pred_check
      _
    $region27: #{tpu_custom_call.1} parent=1 // pred_check_branch
      %55 = sbr.rel (0) target = $region29
    $region28: #{tpu_custom_call.1} parent=1 // pred_region
      %56 = dma.done [#allocation7], 1024
    $region29: #{tpu_custom_call.1} parent=1 // pred_fallthru
      _
    %p58 = scmp.eq.s32.totalorder 0, 0
    // Predicated region
    $region30: #{tpu_custom_call.1} parent=1 // pred_check
      %p59 = pneg %p58
    $region31: #{tpu_custom_call.1} parent=1 // pred_check_branch
      %61 = sbr.rel (%p59) target = $region33
    $region32: #{tpu_custom_call.1} parent=1 // pred_region
      %62 = vst [vmem:[#allocation2] sm:$0xff] 0.0
    $region33: #{tpu_custom_call.1} parent=1 // pred_fallthru
      _
    %v63 = vld [vmem:[#allocation2] sm:$0xff]
    %v64 = vld [vmem:[#allocation3] sm:$0xff]
    %v65 = vld [vmem:[#allocation3 + $0x8] sm:$0xff]
    %v66 = vld [vmem:[#allocation3 + $0x10] sm:$0xff]
    %v67 = vld [vmem:[#allocation3 + $0x18] sm:$0xff]
    %v68 = vld [vmem:[#allocation6] sm:$0xf]
    %v69 = vld [vmem:[#allocation6 + $0x4] sm:$0xf]
    %v70 = vld [vmem:[#allocation6 + $0x8] sm:$0xf]
    %v71 = vld [vmem:[#allocation6 + $0xc] sm:$0xf]
    %v72 = vld [vmem:[#allocation6 + $0x10] sm:$0xf]
    %v73 = vld [vmem:[#allocation6 + $0x14] sm:$0xf]
    %v74 = vld [vmem:[#allocation6 + $0x18] sm:$0xf]
    %v75 = vld [vmem:[#allocation6 + $0x1c] sm:$0xf]
    %v76 = vld [vmem:[#allocation6 + $0x20] sm:$0xf]
    %v77 = vld [vmem:[#allocation6 + $0x24] sm:$0xf]
    %v78 = vld [vmem:[#allocation6 + $0x28] sm:$0xf]
    %v79 = vld [vmem:[#allocation6 + $0x2c] sm:$0xf]
    %v80 = vld [vmem:[#allocation6 + $0x30] sm:$0xf]
    %v81 = vld [vmem:[#allocation6 + $0x34] sm:$0xf]
    %v82 = vld [vmem:[#allocation6 + $0x38] sm:$0xf]
    %v83 = vld [vmem:[#allocation6 + $0x3c] sm:$0xf]
    %v84 = vld [vmem:[#allocation6 + $0x40] sm:$0xf]
    %v85 = vld [vmem:[#allocation6 + $0x44] sm:$0xf]
    %v86 = vld [vmem:[#allocation6 + $0x48] sm:$0xf]
    %v87 = vld [vmem:[#allocation6 + $0x4c] sm:$0xf]
    %v88 = vld [vmem:[#allocation6 + $0x50] sm:$0xf]
    %v89 = vld [vmem:[#allocation6 + $0x54] sm:$0xf]
    %v90 = vld [vmem:[#allocation6 + $0x58] sm:$0xf]
    %v91 = vld [vmem:[#allocation6 + $0x5c] sm:$0xf]
    %v92 = vld [vmem:[#allocation6 + $0x60] sm:$0xf]
    %v93 = vld [vmem:[#allocation6 + $0x64] sm:$0xf]
    %v94 = vld [vmem:[#allocation6 + $0x68] sm:$0xf]
    %v95 = vld [vmem:[#allocation6 + $0x6c] sm:$0xf]
    %v96 = vld [vmem:[#allocation6 + $0x70] sm:$0xf]
    %v97 = vld [vmem:[#allocation6 + $0x74] sm:$0xf]
    %v98 = vld [vmem:[#allocation6 + $0x78] sm:$0xf]
    %v99 = vld [vmem:[#allocation6 + $0x7c] sm:$0xf]
    %v100 = vld [vmem:[#allocation6 + $0x80] sm:$0xf]
    %v101 = vld [vmem:[#allocation6 + $0x84] sm:$0xf]
    %v102 = vld [vmem:[#allocation6 + $0x88] sm:$0xf]
    %v103 = vld [vmem:[#allocation6 + $0x8c] sm:$0xf]
    %v104 = vld [vmem:[#allocation6 + $0x90] sm:$0xf]
    %v105 = vld [vmem:[#allocation6 + $0x94] sm:$0xf]
    %v106 = vld [vmem:[#allocation6 + $0x98] sm:$0xf]
    %v107 = vld [vmem:[#allocation6 + $0x9c] sm:$0xf]
    %v108 = vld [vmem:[#allocation6 + $0xa0] sm:$0xf]
    %v109 = vld [vmem:[#allocation6 + $0xa4] sm:$0xf]
    %v110 = vld [vmem:[#allocation6 + $0xa8] sm:$0xf]
    %v111 = vld [vmem:[#allocation6 + $0xac] sm:$0xf]
    %v112 = vld [vmem:[#allocation6 + $0xb0] sm:$0xf]
    %v113 = vld [vmem:[#allocation6 + $0xb4] sm:$0xf]
    %v114 = vld [vmem:[#allocation6 + $0xb8] sm:$0xf]
    %v115 = vld [vmem:[#allocation6 + $0xbc] sm:$0xf]
    %v116 = vld [vmem:[#allocation6 + $0xc0] sm:$0xf]
    %v117 = vld [vmem:[#allocation6 + $0xc4] sm:$0xf]
    %v118 = vld [vmem:[#allocation6 + $0xc8] sm:$0xf]
    %v119 = vld [vmem:[#allocation6 + $0xcc] sm:$0xf]
    %v120 = vld [vmem:[#allocation6 + $0xd0] sm:$0xf]
    %v121 = vld [vmem:[#allocation6 + $0xd4] sm:$0xf]
    %v122 = vld [vmem:[#allocation6 + $0xd8] sm:$0xf]
    %v123 = vld [vmem:[#allocation6 + $0xdc] sm:$0xf]
    %v124 = vld [vmem:[#allocation6 + $0xe0] sm:$0xf]
    %v125 = vld [vmem:[#allocation6 + $0xe4] sm:$0xf]
    %v126 = vld [vmem:[#allocation6 + $0xe8] sm:$0xf]
    %v127 = vld [vmem:[#allocation6 + $0xec] sm:$0xf]
    %v128 = vld [vmem:[#allocation6 + $0xf0] sm:$0xf]
    %v129 = vld [vmem:[#allocation6 + $0xf4] sm:$0xf]
    %v130 = vld [vmem:[#allocation6 + $0xf8] sm:$0xf]
    %v131 = vld [vmem:[#allocation6 + $0xfc] sm:$0xf]
    %v132 = vld [vmem:[#allocation6 + $0x100] sm:$0xf]
    %v133 = vld [vmem:[#allocation6 + $0x104] sm:$0xf]
    %v134 = vld [vmem:[#allocation6 + $0x108] sm:$0xf]
    %v135 = vld [vmem:[#allocation6 + $0x10c] sm:$0xf]
    %v136 = vld [vmem:[#allocation6 + $0x110] sm:$0xf]
    %v137 = vld [vmem:[#allocation6 + $0x114] sm:$0xf]
    %v138 = vld [vmem:[#allocation6 + $0x118] sm:$0xf]
    %v139 = vld [vmem:[#allocation6 + $0x11c] sm:$0xf]
    %v140 = vld [vmem:[#allocation6 + $0x120] sm:$0xf]
    %v141 = vld [vmem:[#allocation6 + $0x124] sm:$0xf]
    %v142 = vld [vmem:[#allocation6 + $0x128] sm:$0xf]
    %v143 = vld [vmem:[#allocation6 + $0x12c] sm:$0xf]
    %v144 = vld [vmem:[#allocation6 + $0x130] sm:$0xf]
    %v145 = vld [vmem:[#allocation6 + $0x134] sm:$0xf]
    %v146 = vld [vmem:[#allocation6 + $0x138] sm:$0xf]
    %v147 = vld [vmem:[#allocation6 + $0x13c] sm:$0xf]
    %v148 = vld [vmem:[#allocation6 + $0x140] sm:$0xf]
    %v149 = vld [vmem:[#allocation6 + $0x144] sm:$0xf]
    %v150 = vld [vmem:[#allocation6 + $0x148] sm:$0xf]
    %v151 = vld [vmem:[#allocation6 + $0x14c] sm:$0xf]
    %v152 = vld [vmem:[#allocation6 + $0x150] sm:$0xf]
    %v153 = vld [vmem:[#allocation6 + $0x154] sm:$0xf]
    %v154 = vld [vmem:[#allocation6 + $0x158] sm:$0xf]
    %v155 = vld [vmem:[#allocation6 + $0x15c] sm:$0xf]
    %v156 = vld [vmem:[#allocation6 + $0x160] sm:$0xf]
    %v157 = vld [vmem:[#allocation6 + $0x164] sm:$0xf]
    %v158 = vld [vmem:[#allocation6 + $0x168] sm:$0xf]
    %v159 = vld [vmem:[#allocation6 + $0x16c] sm:$0xf]
    %v160 = vld [vmem:[#allocation6 + $0x170] sm:$0xf]
    %v161 = vld [vmem:[#allocation6 + $0x174] sm:$0xf]
    %v162 = vld [vmem:[#allocation6 + $0x178] sm:$0xf]
    %v163 = vld [vmem:[#allocation6 + $0x17c] sm:$0xf]
    %v164 = vld [vmem:[#allocation6 + $0x180] sm:$0xf]
    %v165 = vld [vmem:[#allocation6 + $0x184] sm:$0xf]
    %v166 = vld [vmem:[#allocation6 + $0x188] sm:$0xf]
    %v167 = vld [vmem:[#allocation6 + $0x18c] sm:$0xf]
    %v168 = vld [vmem:[#allocation6 + $0x190] sm:$0xf]
    %v169 = vld [vmem:[#allocation6 + $0x194] sm:$0xf]
    %v170 = vld [vmem:[#allocation6 + $0x198] sm:$0xf]
    %v171 = vld [vmem:[#allocation6 + $0x19c] sm:$0xf]
    %v172 = vld [vmem:[#allocation6 + $0x1a0] sm:$0xf]
    %v173 = vld [vmem:[#allocation6 + $0x1a4] sm:$0xf]
    %v174 = vld [vmem:[#allocation6 + $0x1a8] sm:$0xf]
    %v175 = vld [vmem:[#allocation6 + $0x1ac] sm:$0xf]
    %v176 = vld [vmem:[#allocation6 + $0x1b0] sm:$0xf]
    %v177 = vld [vmem:[#allocation6 + $0x1b4] sm:$0xf]
    %v178 = vld [vmem:[#allocation6 + $0x1b8] sm:$0xf]
    %v179 = vld [vmem:[#allocation6 + $0x1bc] sm:$0xf]
    %v180 = vld [vmem:[#allocation6 + $0x1c0] sm:$0xf]
    %v181 = vld [vmem:[#allocation6 + $0x1c4] sm:$0xf]
    %v182 = vld [vmem:[#allocation6 + $0x1c8] sm:$0xf]
    %v183 = vld [vmem:[#allocation6 + $0x1cc] sm:$0xf]
    %v184 = vld [vmem:[#allocation6 + $0x1d0] sm:$0xf]
    %v185 = vld [vmem:[#allocation6 + $0x1d4] sm:$0xf]
    %v186 = vld [vmem:[#allocation6 + $0x1d8] sm:$0xf]
    %v187 = vld [vmem:[#allocation6 + $0x1dc] sm:$0xf]
    %v188 = vld [vmem:[#allocation6 + $0x1e0] sm:$0xf]
    %v189 = vld [vmem:[#allocation6 + $0x1e4] sm:$0xf]
    %v190 = vld [vmem:[#allocation6 + $0x1e8] sm:$0xf]
    %v191 = vld [vmem:[#allocation6 + $0x1ec] sm:$0xf]
    %v192 = vld [vmem:[#allocation6 + $0x1f0] sm:$0xf]
    %v193 = vld [vmem:[#allocation6 + $0x1f4] sm:$0xf]
    %v194 = vld [vmem:[#allocation6 + $0x1f8] sm:$0xf]
    %v195 = vld [vmem:[#allocation6 + $0x1fc] sm:$0xf]
    %v200 = vunpack.c.l.b16 %v64
    %v201 = vunpack.c.h.b16 %v64
    %v202 = vunpack.c.l.b16 %v65
    %v203 = vunpack.c.h.b16 %v65
    %v204 = vunpack.c.l.b16 %v66
    %v205 = vunpack.c.h.b16 %v66
    %v206 = vunpack.c.l.b16 %v67
    %v207 = vunpack.c.h.b16 %v67
    %v208 = vpack.c.b16 %v200, %v200
    %v209 = vpack.c.b16 %v201, %v201
    %v210 = vpack.c.b16 %v202, %v202
    %v211 = vpack.c.b16 %v203, %v203
    %v212 = vpack.c.b16 %v204, %v204
    %v213 = vpack.c.b16 %v205, %v205
    %v214 = vpack.c.b16 %v206, %v206
    %v215 = vpack.c.b16 %v207, %v207
    %v352 = vunpack.c.l.b16 %v68
    %v353 = vunpack.c.l.b16 %v69
    %v354 = vunpack.c.l.b16 %v70
    %v355 = vunpack.c.l.b16 %v71
    %v356 = vunpack.c.l.b16 %v72
    %v357 = vunpack.c.l.b16 %v73
    %v358 = vunpack.c.l.b16 %v74
    %v359 = vunpack.c.l.b16 %v75
    %v360 = vunpack.c.l.b16 %v76
    %v361 = vunpack.c.l.b16 %v77
    %v362 = vunpack.c.l.b16 %v78
    %v363 = vunpack.c.l.b16 %v79
    %v364 = vunpack.c.l.b16 %v80
    %v365 = vunpack.c.l.b16 %v81
    %v366 = vunpack.c.l.b16 %v82
    %v367 = vunpack.c.l.b16 %v83
    %v368 = vunpack.c.l.b16 %v84
    %v369 = vunpack.c.l.b16 %v85
    %v370 = vunpack.c.l.b16 %v86
    %v371 = vunpack.c.l.b16 %v87
    %v372 = vunpack.c.l.b16 %v88
    %v373 = vunpack.c.l.b16 %v89
    %v374 = vunpack.c.l.b16 %v90
    %v375 = vunpack.c.l.b16 %v91
    %v376 = vunpack.c.l.b16 %v92
    %v377 = vunpack.c.l.b16 %v93
    %v378 = vunpack.c.l.b16 %v94
    %v379 = vunpack.c.l.b16 %v95
    %v380 = vunpack.c.l.b16 %v96
    %v381 = vunpack.c.l.b16 %v97
    %v382 = vunpack.c.l.b16 %v98
    %v383 = vunpack.c.l.b16 %v99
    %v384 = vunpack.c.l.b16 %v100
    %v385 = vunpack.c.l.b16 %v101
    %v386 = vunpack.c.l.b16 %v102
    %v387 = vunpack.c.l.b16 %v103
    %v388 = vunpack.c.l.b16 %v104
    %v389 = vunpack.c.l.b16 %v105
    %v390 = vunpack.c.l.b16 %v106
    %v391 = vunpack.c.l.b16 %v107
    %v392 = vunpack.c.l.b16 %v108
    %v393 = vunpack.c.l.b16 %v109
    %v394 = vunpack.c.l.b16 %v110
    %v395 = vunpack.c.l.b16 %v111
    %v396 = vunpack.c.l.b16 %v112
    %v397 = vunpack.c.l.b16 %v113
    %v398 = vunpack.c.l.b16 %v114
    %v399 = vunpack.c.l.b16 %v115
    %v400 = vunpack.c.l.b16 %v116
    %v401 = vunpack.c.l.b16 %v117
    %v402 = vunpack.c.l.b16 %v118
    %v403 = vunpack.c.l.b16 %v119
    %v404 = vunpack.c.l.b16 %v120
    %v405 = vunpack.c.l.b16 %v121
    %v406 = vunpack.c.l.b16 %v122
    %v407 = vunpack.c.l.b16 %v123
    %v408 = vunpack.c.l.b16 %v124
    %v409 = vunpack.c.l.b16 %v125
    %v410 = vunpack.c.l.b16 %v126
    %v411 = vunpack.c.l.b16 %v127
    %v412 = vunpack.c.l.b16 %v128
    %v413 = vunpack.c.l.b16 %v129
    %v414 = vunpack.c.l.b16 %v130
    %v415 = vunpack.c.l.b16 %v131
    %v416 = vunpack.c.l.b16 %v132
    %v417 = vunpack.c.l.b16 %v133
    %v418 = vunpack.c.l.b16 %v134
    %v419 = vunpack.c.l.b16 %v135
    %v420 = vunpack.c.l.b16 %v136
    %v421 = vunpack.c.l.b16 %v137
    %v422 = vunpack.c.l.b16 %v138
    %v423 = vunpack.c.l.b16 %v139
    %v424 = vunpack.c.l.b16 %v140
    %v425 = vunpack.c.l.b16 %v141
    %v426 = vunpack.c.l.b16 %v142
    %v427 = vunpack.c.l.b16 %v143
    %v428 = vunpack.c.l.b16 %v144
    %v429 = vunpack.c.l.b16 %v145
    %v430 = vunpack.c.l.b16 %v146
    %v431 = vunpack.c.l.b16 %v147
    %v432 = vunpack.c.l.b16 %v148
    %v433 = vunpack.c.l.b16 %v149
    %v434 = vunpack.c.l.b16 %v150
    %v435 = vunpack.c.l.b16 %v151
    %v436 = vunpack.c.l.b16 %v152
    %v437 = vunpack.c.l.b16 %v153
    %v438 = vunpack.c.l.b16 %v154
    %v439 = vunpack.c.l.b16 %v155
    %v440 = vunpack.c.l.b16 %v156
    %v441 = vunpack.c.l.b16 %v157
    %v442 = vunpack.c.l.b16 %v158
    %v443 = vunpack.c.l.b16 %v159
    %v444 = vunpack.c.l.b16 %v160
    %v445 = vunpack.c.l.b16 %v161
    %v446 = vunpack.c.l.b16 %v162
    %v447 = vunpack.c.l.b16 %v163
    %v448 = vunpack.c.l.b16 %v164
    %v449 = vunpack.c.l.b16 %v165
    %v450 = vunpack.c.l.b16 %v166
    %v451 = vunpack.c.l.b16 %v167
    %v452 = vunpack.c.l.b16 %v168
    %v453 = vunpack.c.l.b16 %v169
    %v454 = vunpack.c.l.b16 %v170
    %v455 = vunpack.c.l.b16 %v171
    %v456 = vunpack.c.l.b16 %v172
    %v457 = vunpack.c.l.b16 %v173
    %v458 = vunpack.c.l.b16 %v174
    %v459 = vunpack.c.l.b16 %v175
    %v460 = vunpack.c.l.b16 %v176
    %v461 = vunpack.c.l.b16 %v177
    %v462 = vunpack.c.l.b16 %v178
    %v463 = vunpack.c.l.b16 %v179
    %v464 = vunpack.c.l.b16 %v180
    %v465 = vunpack.c.l.b16 %v181
    %v466 = vunpack.c.l.b16 %v182
    %v467 = vunpack.c.l.b16 %v183
    %v468 = vunpack.c.l.b16 %v184
    %v469 = vunpack.c.l.b16 %v185
    %v470 = vunpack.c.l.b16 %v186
    %v471 = vunpack.c.l.b16 %v187
    %v472 = vunpack.c.l.b16 %v188
    %v473 = vunpack.c.l.b16 %v189
    %v474 = vunpack.c.l.b16 %v190
    %v475 = vunpack.c.l.b16 %v191
    %v476 = vunpack.c.l.b16 %v192
    %v477 = vunpack.c.l.b16 %v193
    %v478 = vunpack.c.l.b16 %v194
    %v479 = vunpack.c.l.b16 %v195
    %v480 = vpack.c.b16 %v353, %v352
    %v481 = vpack.c.b16 %v355, %v354
    %v482 = vpack.c.b16 %v357, %v356
    %v483 = vpack.c.b16 %v359, %v358
    %v484 = vpack.c.b16 %v361, %v360
    %v485 = vpack.c.b16 %v363, %v362
    %v486 = vpack.c.b16 %v365, %v364
    %v487 = vpack.c.b16 %v367, %v366
    %v488 = vpack.c.b16 %v369, %v368
    %v489 = vpack.c.b16 %v371, %v370
    %v490 = vpack.c.b16 %v373, %v372
    %v491 = vpack.c.b16 %v375, %v374
    %v492 = vpack.c.b16 %v377, %v376
    %v493 = vpack.c.b16 %v379, %v378
    %v494 = vpack.c.b16 %v381, %v380
    %v495 = vpack.c.b16 %v383, %v382
    %v496 = vpack.c.b16 %v385, %v384
    %v497 = vpack.c.b16 %v387, %v386
    %v498 = vpack.c.b16 %v389, %v388
    %v499 = vpack.c.b16 %v391, %v390
    %v500 = vpack.c.b16 %v393, %v392
    %v501 = vpack.c.b16 %v395, %v394
    %v502 = vpack.c.b16 %v397, %v396
    %v503 = vpack.c.b16 %v399, %v398
    %v504 = vpack.c.b16 %v401, %v400
    %v505 = vpack.c.b16 %v403, %v402
    %v506 = vpack.c.b16 %v405, %v404
    %v507 = vpack.c.b16 %v407, %v406
    %v508 = vpack.c.b16 %v409, %v408
    %v509 = vpack.c.b16 %v411, %v410
    %v510 = vpack.c.b16 %v413, %v412
    %v511 = vpack.c.b16 %v415, %v414
    %v512 = vpack.c.b16 %v417, %v416
    %v513 = vpack.c.b16 %v419, %v418
    %v514 = vpack.c.b16 %v421, %v420
    %v515 = vpack.c.b16 %v423, %v422
    %v516 = vpack.c.b16 %v425, %v424
    %v517 = vpack.c.b16 %v427, %v426
    %v518 = vpack.c.b16 %v429, %v428
    %v519 = vpack.c.b16 %v431, %v430
    %v520 = vpack.c.b16 %v433, %v432
    %v521 = vpack.c.b16 %v435, %v434
    %v522 = vpack.c.b16 %v437, %v436
    %v523 = vpack.c.b16 %v439, %v438
    %v524 = vpack.c.b16 %v441, %v440
    %v525 = vpack.c.b16 %v443, %v442
    %v526 = vpack.c.b16 %v445, %v444
    %v527 = vpack.c.b16 %v447, %v446
    %v528 = vpack.c.b16 %v449, %v448
    %v529 = vpack.c.b16 %v451, %v450
    %v530 = vpack.c.b16 %v453, %v452
    %v531 = vpack.c.b16 %v455, %v454
    %v532 = vpack.c.b16 %v457, %v456
    %v533 = vpack.c.b16 %v459, %v458
    %v534 = vpack.c.b16 %v461, %v460
    %v535 = vpack.c.b16 %v463, %v462
    %v536 = vpack.c.b16 %v465, %v464
    %v537 = vpack.c.b16 %v467, %v466
    %v538 = vpack.c.b16 %v469, %v468
    %v539 = vpack.c.b16 %v471, %v470
    %v540 = vpack.c.b16 %v473, %v472
    %v541 = vpack.c.b16 %v475, %v474
    %v542 = vpack.c.b16 %v477, %v476
    %v543 = vpack.c.b16 %v479, %v478
    %608 = vmatprep.subr.bf16.mxu0 0
    %609 = vmatpush1.bf16.msra.mxu0 %v480
    %610 = vmatprep.subr.bf16.mxu0 0
    %611 = vmatpush1.bf16.msra.mxu0 %v481
    %612 = vmatprep.subr.bf16.mxu0 0
    %613 = vmatpush1.bf16.msra.mxu0 %v482
    %614 = vmatprep.subr.bf16.mxu0 0
    %615 = vmatpush1.bf16.msra.mxu0 %v483
    %616 = vmatprep.subr.bf16.mxu0 0
    %617 = vmatpush1.bf16.msra.mxu0 %v484
    %618 = vmatprep.subr.bf16.mxu0 0
    %619 = vmatpush1.bf16.msra.mxu0 %v485
    %620 = vmatprep.subr.bf16.mxu0 0
    %621 = vmatpush1.bf16.msra.mxu0 %v486
    %622 = vmatprep.subr.bf16.mxu0 0
    %623 = vmatpush1.bf16.msra.mxu0 %v487
    %624 = vmatprep.subr.bf16.mxu0 0
    %625 = vmatpush1.bf16.msra.mxu0 %v488
    %626 = vmatprep.subr.bf16.mxu0 0
    %627 = vmatpush1.bf16.msra.mxu0 %v489
    %628 = vmatprep.subr.bf16.mxu0 0
    %629 = vmatpush1.bf16.msra.mxu0 %v490
    %630 = vmatprep.subr.bf16.mxu0 0
    %631 = vmatpush1.bf16.msra.mxu0 %v491
    %632 = vmatprep.subr.bf16.mxu0 0
    %633 = vmatpush1.bf16.msra.mxu0 %v492
    %634 = vmatprep.subr.bf16.mxu0 0
    %635 = vmatpush1.bf16.msra.mxu0 %v493
    %636 = vmatprep.subr.bf16.mxu0 0
    %637 = vmatpush1.bf16.msra.mxu0 %v494
    %638 = vmatprep.subr.bf16.mxu0 0
    %639 = vmatpush1.bf16.msra.mxu0 %v495
    %640 = vmatprep.mubr.bf16.mxu0 %v209
    %641 = vmatmul.mubr.bf16.gmra.mrb[0].mxu0 %v208
    %v642 = vpop.f32.mrb[0].mxu0
    %v643 = vadd.f32 0.0, %v642
    %v644 = vpop.f32.mrb[0].mxu0
    %v645 = vpop.f32.mrb[0].mxu0
    %v646 = vpop.f32.mrb[0].mxu0
    %647 = vdwg.mxu0
    %648 = vmatprep.subr.bf16.mxu0 0
    %649 = vmatpush1.bf16.msra.mxu0 %v496
    %650 = vmatprep.subr.bf16.mxu0 0
    %651 = vmatpush1.bf16.msra.mxu0 %v497
    %652 = vmatprep.subr.bf16.mxu0 0
    %653 = vmatpush1.bf16.msra.mxu0 %v498
    %654 = vmatprep.subr.bf16.mxu0 0
    %655 = vmatpush1.bf16.msra.mxu0 %v499
    %656 = vmatprep.subr.bf16.mxu0 0
    %657 = vmatpush1.bf16.msra.mxu0 %v500
    %658 = vmatprep.subr.bf16.mxu0 0
    %659 = vmatpush1.bf16.msra.mxu0 %v501
    %660 = vmatprep.subr.bf16.mxu0 0
    %661 = vmatpush1.bf16.msra.mxu0 %v502
    %662 = vmatprep.subr.bf16.mxu0 0
    %663 = vmatpush1.bf16.msra.mxu0 %v503
    %664 = vmatprep.subr.bf16.mxu0 0
    %665 = vmatpush1.bf16.msra.mxu0 %v504
    %666 = vmatprep.subr.bf16.mxu0 0
    %667 = vmatpush1.bf16.msra.mxu0 %v505
    %668 = vmatprep.subr.bf16.mxu0 0
    %669 = vmatpush1.bf16.msra.mxu0 %v506
    %670 = vmatprep.subr.bf16.mxu0 0
    %671 = vmatpush1.bf16.msra.mxu0 %v507
    %672 = vmatprep.subr.bf16.mxu0 0
    %673 = vmatpush1.bf16.msra.mxu0 %v508
    %674 = vmatprep.subr.bf16.mxu0 0
    %675 = vmatpush1.bf16.msra.mxu0 %v509
    %676 = vmatprep.subr.bf16.mxu0 0
    %677 = vmatpush1.bf16.msra.mxu0 %v510
    %678 = vmatprep.subr.bf16.mxu0 0
    %679 = vmatpush1.bf16.msra.mxu0 %v511
    %680 = vmatprep.mubr.bf16.mxu0 %v211
    %681 = vmatmul.mubr.bf16.gmra.mrb[0].mxu0 %v210
    %v682 = vpop.f32.mrb[0].mxu0
    %v683 = vadd.f32 %v643, %v682
    %v684 = vpop.f32.mrb[0].mxu0
    %v685 = vpop.f32.mrb[0].mxu0
    %v686 = vpop.f32.mrb[0].mxu0
    %687 = vdwg.mxu0
    %688 = vmatprep.subr.bf16.mxu0 0
    %689 = vmatpush1.bf16.msra.mxu0 %v512
    %690 = vmatprep.subr.bf16.mxu0 0
    %691 = vmatpush1.bf16.msra.mxu0 %v513
    %692 = vmatprep.subr.bf16.mxu0 0
    %693 = vmatpush1.bf16.msra.mxu0 %v514
    %694 = vmatprep.subr.bf16.mxu0 0
    %695 = vmatpush1.bf16.msra.mxu0 %v515
    %696 = vmatprep.subr.bf16.mxu0 0
    %697 = vmatpush1.bf16.msra.mxu0 %v516
    %698 = vmatprep.subr.bf16.mxu0 0
    %699 = vmatpush1.bf16.msra.mxu0 %v517
    %700 = vmatprep.subr.bf16.mxu0 0
    %701 = vmatpush1.bf16.msra.mxu0 %v518
    %702 = vmatprep.subr.bf16.mxu0 0
    %703 = vmatpush1.bf16.msra.mxu0 %v519
    %704 = vmatprep.subr.bf16.mxu0 0
    %705 = vmatpush1.bf16.msra.mxu0 %v520
    %706 = vmatprep.subr.bf16.mxu0 0
    %707 = vmatpush1.bf16.msra.mxu0 %v521
    %708 = vmatprep.subr.bf16.mxu0 0
    %709 = vmatpush1.bf16.msra.mxu0 %v522
    %710 = vmatprep.subr.bf16.mxu0 0
    %711 = vmatpush1.bf16.msra.mxu0 %v523
    %712 = vmatprep.subr.bf16.mxu0 0
    %713 = vmatpush1.bf16.msra.mxu0 %v524
    %714 = vmatprep.subr.bf16.mxu0 0
    %715 = vmatpush1.bf16.msra.mxu0 %v525
    %716 = vmatprep.subr.bf16.mxu0 0
    %717 = vmatpush1.bf16.msra.mxu0 %v526
    %718 = vmatprep.subr.bf16.mxu0 0
    %719 = vmatpush1.bf16.msra.mxu0 %v527
    %720 = vmatprep.mubr.bf16.mxu0 %v213
    %721 = vmatmul.mubr.bf16.gmra.mrb[0].mxu0 %v212
    %v722 = vpop.f32.mrb[0].mxu0
    %v723 = vadd.f32 %v683, %v722
    %v724 = vpop.f32.mrb[0].mxu0
    %v725 = vpop.f32.mrb[0].mxu0
    %v726 = vpop.f32.mrb[0].mxu0
    %727 = vdwg.mxu0
    %728 = vmatprep.subr.bf16.mxu0 0
    %729 = vmatpush1.bf16.msra.mxu0 %v528
    %730 = vmatprep.subr.bf16.mxu0 0
    %731 = vmatpush1.bf16.msra.mxu0 %v529
    %732 = vmatprep.subr.bf16.mxu0 0
    %733 = vmatpush1.bf16.msra.mxu0 %v530
    %734 = vmatprep.subr.bf16.mxu0 0
    %735 = vmatpush1.bf16.msra.mxu0 %v531
    %736 = vmatprep.subr.bf16.mxu0 0
    %737 = vmatpush1.bf16.msra.mxu0 %v532
    %738 = vmatprep.subr.bf16.mxu0 0
    %739 = vmatpush1.bf16.msra.mxu0 %v533
    %740 = vmatprep.subr.bf16.mxu0 0
    %741 = vmatpush1.bf16.msra.mxu0 %v534
    %742 = vmatprep.subr.bf16.mxu0 0
    %743 = vmatpush1.bf16.msra.mxu0 %v535
    %744 = vmatprep.subr.bf16.mxu0 0
    %745 = vmatpush1.bf16.msra.mxu0 %v536
    %746 = vmatprep.subr.bf16.mxu0 0
    %747 = vmatpush1.bf16.msra.mxu0 %v537
    %748 = vmatprep.subr.bf16.mxu0 0
    %749 = vmatpush1.bf16.msra.mxu0 %v538
    %750 = vmatprep.subr.bf16.mxu0 0
    %751 = vmatpush1.bf16.msra.mxu0 %v539
    %752 = vmatprep.subr.bf16.mxu0 0
    %753 = vmatpush1.bf16.msra.mxu0 %v540
    %754 = vmatprep.subr.bf16.mxu0 0
    %755 = vmatpush1.bf16.msra.mxu0 %v541
    %756 = vmatprep.subr.bf16.mxu0 0
    %757 = vmatpush1.bf16.msra.mxu0 %v542
    %758 = vmatprep.subr.bf16.mxu0 0
    %759 = vmatpush1.bf16.msra.mxu0 %v543
    %760 = vmatprep.mubr.bf16.mxu0 %v215
    %761 = vmatmul.mubr.bf16.gmra.mrb[0].mxu0 %v214
    %v762 = vpop.f32.mrb[0].mxu0
    %v763 = vadd.f32 %v723, %v762
    %v764 = vpop.f32.mrb[0].mxu0
    %v765 = vpop.f32.mrb[0].mxu0
    %v766 = vpop.f32.mrb[0].mxu0
    %767 = vdwg.mxu0
    %v768 = vadd.f32 %v63, %v763
    %769 = vst [vmem:[#allocation2] sm:$0xff] %v768
    // Predicated region
    $region34: #{tpu_custom_call.1} parent=1 // pred_check
      %p770 = pneg %p58
    $region35: #{tpu_custom_call.1} parent=1 // pred_check_branch
      %772 = sbr.rel (%p770) target = $region37
    $region36: #{tpu_custom_call.1} parent=1 // pred_region
      %v773 = vld [vmem:[#allocation2] sm:$0xff]
      %v774 = vmul.f32 %v773, %v773
      %775 = vadd.xlane.f32.xlu0 %v774
      %v776 = vpop.xlane.xlu0 %775
      %v777 = vmax.f32 %v776, 1e-24
      %v778 = vrsqrt.pop %v777
      %v779 = vmul.f32 %v773, %v778
      %v780 = vpack.c.bf16 %v779, %v779
      %v781 = vld [vmem:[#allocation8] sm:$0xf]
      %v782 = vld [vmem:[#allocation8 + $0x4] sm:$0xf]
      %v783 = vld [vmem:[#allocation8 + $0x8] sm:$0xf]
      %v784 = vld [vmem:[#allocation8 + $0xc] sm:$0xf]
      %v785 = vld [vmem:[#allocation8 + $0x10] sm:$0xf]
      %v786 = vld [vmem:[#allocation8 + $0x14] sm:$0xf]
      %v787 = vld [vmem:[#allocation8 + $0x18] sm:$0xf]
      %v788 = vld [vmem:[#allocation8 + $0x1c] sm:$0xf]
      %v789 = vld [vmem:[#allocation8 + $0x20] sm:$0xf]
      %v790 = vld [vmem:[#allocation8 + $0x24] sm:$0xf]
      %v791 = vld [vmem:[#allocation8 + $0x28] sm:$0xf]
      %v792 = vld [vmem:[#allocation8 + $0x2c] sm:$0xf]
      %v793 = vld [vmem:[#allocation8 + $0x30] sm:$0xf]
      %v794 = vld [vmem:[#allocation8 + $0x34] sm:$0xf]
      %v795 = vld [vmem:[#allocation8 + $0x38] sm:$0xf]
      %v796 = vld [vmem:[#allocation8 + $0x3c] sm:$0xf]
      %v797 = vld [vmem:[%s3] sm:$0x1]
      %v799 = vlaneseq
      %v800 = vshrl.u32 %v799, 7
      %v801 = vsub.s32 0, %v800
      %v802 = vrot.slane %v797, %v801
      %v820 = vunpack.c.l.b16 %v781
      %v821 = vunpack.c.l.b16 %v782
      %v822 = vunpack.c.l.b16 %v783
      %v823 = vunpack.c.l.b16 %v784
      %v824 = vunpack.c.l.b16 %v785
      %v825 = vunpack.c.l.b16 %v786
      %v826 = vunpack.c.l.b16 %v787
      %v827 = vunpack.c.l.b16 %v788
      %v828 = vunpack.c.l.b16 %v789
      %v829 = vunpack.c.l.b16 %v790
      %v830 = vunpack.c.l.b16 %v791
      %v831 = vunpack.c.l.b16 %v792
      %v832 = vunpack.c.l.b16 %v793
      %v833 = vunpack.c.l.b16 %v794
      %v834 = vunpack.c.l.b16 %v795
      %v835 = vunpack.c.l.b16 %v796
      %v836 = vpack.c.b16 %v821, %v820
      %v837 = vpack.c.b16 %v823, %v822
      %v838 = vpack.c.b16 %v825, %v824
      %v839 = vpack.c.b16 %v827, %v826
      %v840 = vpack.c.b16 %v829, %v828
      %v841 = vpack.c.b16 %v831, %v830
      %v842 = vpack.c.b16 %v833, %v832
      %v843 = vpack.c.b16 %v835, %v834
      %852 = vmatprep.subr.bf16.mxu0 0
      %853 = vmatpush1.bf16.msra.mxu0 %v836
      %854 = vmatprep.subr.bf16.mxu0 0
      %855 = vmatpush1.bf16.msra.mxu0 %v837
      %856 = vmatprep.subr.bf16.mxu0 0
      %857 = vmatpush1.bf16.msra.mxu0 %v838
      %858 = vmatprep.subr.bf16.mxu0 0
      %859 = vmatpush1.bf16.msra.mxu0 %v839
      %860 = vmatprep.subr.bf16.mxu0 0
      %861 = vmatpush1.bf16.msra.mxu0 %v840
      %862 = vmatprep.subr.bf16.mxu0 0
      %863 = vmatpush1.bf16.msra.mxu0 %v841
      %864 = vmatprep.subr.bf16.mxu0 0
      %865 = vmatpush1.bf16.msra.mxu0 %v842
      %866 = vmatprep.subr.bf16.mxu0 0
      %867 = vmatpush1.bf16.msra.mxu0 %v843
      %868 = vmatprep.subr.bf16.mxu0 0
      %869 = vmatpush1.bf16.msra.mxu0 0
      %870 = vmatprep.subr.bf16.mxu0 0
      %871 = vmatpush1.bf16.msra.mxu0 0
      %872 = vmatprep.subr.bf16.mxu0 0
      %873 = vmatpush1.bf16.msra.mxu0 0
      %874 = vmatprep.subr.bf16.mxu0 0
      %875 = vmatpush1.bf16.msra.mxu0 0
      %876 = vmatprep.subr.bf16.mxu0 0
      %877 = vmatpush1.bf16.msra.mxu0 0
      %878 = vmatprep.subr.bf16.mxu0 0
      %879 = vmatpush1.bf16.msra.mxu0 0
      %880 = vmatprep.subr.bf16.mxu0 0
      %881 = vmatpush1.bf16.msra.mxu0 0
      %882 = vmatprep.subr.bf16.mxu0 0
      %883 = vmatpush1.bf16.msra.mxu0 0
      %884 = vmatprep.mubr.bf16.mxu0 0
      %885 = vmatmul.mubr.bf16.gmra.mrb[0].mxu0 %v780
      %v886 = vpop.f32.mrb[0].mxu0
      %v887 = vadd.f32 %v802, %v886
      %v888 = vpop.f32.mrb[0].mxu0
      %v889 = vpop.f32.mrb[0].mxu0
      %v890 = vpop.f32.mrb[0].mxu0
      %891 = vdwg.mxu0
      %892 = vst [vmem:[#allocation9] sm:$0xff] %v887
    $region37: #{tpu_custom_call.1} parent=1 // pred_fallthru
      _
    // Predicated region
    $region38: #{tpu_custom_call.1} parent=1 // pred_check
      _
    $region39: #{tpu_custom_call.1} parent=1 // pred_check_branch
      %894 = sbr.rel (0) target = $region41
    $region40: #{tpu_custom_call.1} parent=1 // pred_region
      %s896 = ssub.s32 128, 128
      %897 = vsyncadd [#allocation5], %s896
      %s899 = sshll.u32 [#allocation9], 4
      %s900 = int_to_ptr.vmem [resolvable:$true] %s899
      %902 = dma.vmem_to_hbm [thread:$0]  %s900, 128, %s4, [#allocation5]
    $region41: #{tpu_custom_call.1} parent=1 // pred_fallthru
      _
    // Predicated region
    $region42: #{tpu_custom_call.1} parent=1 // pred_check
      _
    $region43: #{tpu_custom_call.1} parent=1 // pred_check_branch
      %904 = sbr.rel (0) target = $region45
    $region44: #{tpu_custom_call.1} parent=1 // pred_region
      %905 = dma.done [#allocation5], 128
    $region45: #{tpu_custom_call.1} parent=1 // pred_fallthru
      _
    %906 = vsyncpa [#allocation4], 1
    %907 = vsyncpa [#allocation7], 1
    %908 = vsyncpa [#allocation5], 1

</llo_original>
